<compile_context>
chip_gen: v6e
topology: v6e:2x2x1
jax: 0.10.0
libtpu: 0.0.40
codegen_flags: <defaults>
</compile_context>

<pallas_src>
import functools

import jax
import jax.numpy as jnp
from jax.experimental import pallas as pl
from jax.experimental.pallas import tpu as pltpu


def mha_kernel(q_ref, qm_ref, d_ref, dm_ref, wtq_ref, wtd_ref, wo_ref, o_ref, *, num_heads):
    """One (batch, doc) grid step: mask, project, per-head attention, fused output projection."""
    H = num_heads

    # Masked embeddings (bf16; masks are {0,1} so the multiply is exact).
    q = q_ref[...] * qm_ref[...]                  # [Lq, D] bf16,  q = emb(q) * q_mask
    d = d_ref[...] * dm_ref[...]                  # [Lk, D] bf16,  d = emb(d) * d_mask
    Lq, D = q.shape
    Lk = d.shape[0]
    dh = D // H

    wtq = wtq_ref[...]                            # [D, D] bf16  (linear_trans, query_scale folded in)
    wtd = wtd_ref[...]                            # [D, D] bf16  (linear_trans)
    wo = wo_ref[...]                              # [D, D] bf16  (output_linear)

    # --- linear_trans: y = x @ W.T — full-width, lane-dense MXU matmuls (K = N = D) ------
    qh_full = jnp.einsum("ld,ed->le", q, wtq, preferred_element_type=jnp.float32)  # [Lq, D]
    kh_full = jnp.einsum("ld,ed->le", d, wtd, preferred_element_type=jnp.float32)  # [Lk, D]

    # --- split heads: head h = columns h*dh:(h+1)*dh (matches _split_heads) ---------------
    qh = jnp.swapaxes(qh_full.reshape(Lq, H, dh), 0, 1).astype(jnp.bfloat16)       # [H, Lq, dh]
    kh = jnp.swapaxes(kh_full.reshape(Lk, H, dh), 0, 1).astype(jnp.bfloat16)       # [H, Lk, dh]

    # --- scaled dot-product attention (all heads batched) ---------------------------------
    logits = jnp.einsum("hqe,hke->hqk", qh, kh, preferred_element_type=jnp.float32)  # [H, Lq, Lk]
    logits = logits - jnp.max(logits, axis=-1, keepdims=True)
    e = jnp.exp(logits)
    denom = jnp.sum(e, axis=-1, keepdims=True)
    p = e * pl.reciprocal(denom, approx=True)     # softmax(dim=-1); dropout(p=0.0) == identity

    ctx = jnp.einsum("hqk,hke->hqe", p.astype(jnp.bfloat16), kh,
                     preferred_element_type=jnp.float32)                            # [H, Lq, dh]

    # --- merge heads + output_linear fused: one [Lq, D] x [D, D]^T matmul (K = D) ---------
    ctx_full = jnp.swapaxes(ctx, 0, 1).reshape(Lq, D).astype(jnp.bfloat16)          # [Lq, D]
    out = jnp.einsum("qd,jd->qj", ctx_full, wo, preferred_element_type=jnp.float32)  # [Lq, D]

    o_ref[...] = out.astype(o_ref.dtype)


def _build_mha_call(B, Lq, Lk, D, num_heads, n_docs):
    H = num_heads
    kernel = functools.partial(mha_kernel, num_heads=H)

    # `None` in block_shape = size-1 dim squeezed out of the kernel Ref.
    grid_spec = pltpu.PrefetchScalarGridSpec(
        num_scalar_prefetch=0,
        grid=(B, n_docs),                          # doc axis innermost -> q block DMA reused
        in_specs=[
            pl.BlockSpec((None, Lq, D), lambda b, n: (b, 0, 0)),          # q_emb  (bf16)
            pl.BlockSpec((None, Lq, 1), lambda b, n: (b, 0, 0)),          # q_mask (bf16)
            pl.BlockSpec((None, None, Lk, D), lambda b, n: (n, b, 0, 0)), # stacked docs
            pl.BlockSpec((None, None, Lk, 1), lambda b, n: (n, b, 0, 0)), # stacked doc masks
            pl.BlockSpec((D, D), lambda b, n: (0, 0)),                    # W_trans * scale (q side)
            pl.BlockSpec((D, D), lambda b, n: (0, 0)),                    # W_trans (doc side)
            pl.BlockSpec((D, D), lambda b, n: (0, 0)),                    # W_out
        ],
        out_specs=pl.BlockSpec((None, None, Lq, D), lambda b, n: (n, b, 0, 0)),
    )

    # Advisory cost estimate so XLA can schedule the custom call vs. surrounding ops.
    flops_per_step = 2 * D * (2 * Lq * D + Lk * D + 2 * Lq * Lk)
    cost = pl.CostEstimate(
        flops=int(B * n_docs * flops_per_step),
        transcendentals=int(B * n_docs * H * Lq * Lk),
        bytes_accessed=int(B * n_docs * (2 * Lq * D + 2 * Lq + 2 * Lk * D + 2 * Lk + 4 * Lq * D)
                           + 3 * 2 * D * D),
    )

    return pl.pallas_call(
        kernel,
        out_shape=jax.ShapeDtypeStruct((n_docs, B, Lq, D), jnp.float32),
        grid_spec=grid_spec,
        compiler_params=pltpu.CompilerParams(
            dimension_semantics=("parallel", "parallel"),
            vmem_limit_bytes=48 << 20,             # > v5e's 16 MiB default, < v7x's 64 MiB cap
        ),
        cost_estimate=cost,
    )


def multi_head_attention(q_emb, d_pos_emb, d_neg_emb, q_mask, d_pos_mask, d_neg_mask,
                         w_trans, w_out, num_heads):
    """Forward pass of the PyTorch MultiHeadAttention (post-embedding hot path).

    Returns (out_pos, out_neg), each [B, Lq, D] float32.
    """
    B, Lq, D = q_emb.shape
    Lk = d_pos_emb.shape[1]
    H = num_heads
    if D % H != 0:
        raise ValueError("embedding dim must be divisible by the number of attention heads")
    dh = D // H
    scale = float(dh ** (-0.5))
    n_docs = 2

    # Stack the two document branches -> one pallas_call serves both (shared q DMA).
    # NOTE: at real sizes D and Lk should be multiples of 128 (lane-dense stores / logits);
    # pad in the wrapper if they are not.
    d_stacked = jnp.stack([d_pos_emb, d_neg_emb], axis=0).astype(jnp.bfloat16)      # [2,B,Lk,D]
    dm_stacked = jnp.stack([d_pos_mask, d_neg_mask], axis=0).astype(jnp.bfloat16)   # [2,B,Lk,1]

    # bf16 weights, lane dim = D everywhere; query_scale folded into the q-side copy.
    wtq = (w_trans * scale).astype(jnp.bfloat16)   # [D, D]
    wtd = w_trans.astype(jnp.bfloat16)             # [D, D]
    wo = w_out.astype(jnp.bfloat16)                # [D, D]

    args = (q_emb.astype(jnp.bfloat16), q_mask.astype(jnp.bfloat16),
            d_stacked, dm_stacked, wtq, wtd, wo)

    out = _build_mha_call(B, Lq, Lk, D, H, n_docs)(*args)
    return out[0], out[1]


def ref_forward(q_emb, d_pos_emb, d_neg_emb, q_mask, d_pos_mask, d_neg_mask,
                w_trans, w_out, num_heads):
    """Pure-JAX f32 reference mirroring the PyTorch forward."""
    def one(doc_emb, doc_mask):
        q = q_emb * q_mask
        d = doc_emb * doc_mask
        B, Lq, D = q.shape
        Lk = d.shape[1]
        dh = D // num_heads
        queries = q @ w_trans.T
        docs = d @ w_trans.T
        qh = queries.reshape(B, Lq, num_heads, dh).transpose(0, 2, 1, 3) * (dh ** -0.5)
        kh = docs.reshape(B, Lk, num_heads, dh).transpose(0, 2, 1, 3)
        logits = jnp.einsum("bhqd,bhkd->bhqk", qh, kh)
        w = jax.nn.softmax(logits, axis=-1)
        ctx = jnp.einsum("bhqk,bhkd->bhqd", w, kh)
        ctx = ctx.transpose(0, 2, 1, 3).reshape(B, Lq, D)
        return ctx @ w_out.T
    return one(d_pos_emb, d_pos_mask), one(d_neg_emb, d_neg_mask)


if __name__ == "__main__":
    # Small deterministic config.
    B, Lq, Lk, D, H = 2, 8, 16, 32, 4
    VOCAB = 50

    key = jax.random.PRNGKey(0)
    k_emb, k_wt, k_wo, k_q, k_dp, k_dn, k_mq, k_mp, k_mn = jax.random.split(key, 9)

    # emb_mod is modeled as a deterministic embedding-table lookup (plain-JAX glue).
    emb_table = jax.random.normal(k_emb, (VOCAB, D), dtype=jnp.float32) * 0.1
    w_trans = jax.random.normal(k_wt, (D, D), dtype=jnp.float32) * 0.1
    w_out = jax.random.normal(k_wo, (D, D), dtype=jnp.float32) * 0.1

    q_ids = jax.random.randint(k_q, (B, Lq), 0, VOCAB)
    d_pos_ids = jax.random.randint(k_dp, (B, Lk), 0, VOCAB)
    d_neg_ids = jax.random.randint(k_dn, (B, Lk), 0, VOCAB)

    # Masks broadcast over the embedding dim (mostly ones, a few zeros).
    q_mask = (jax.random.uniform(k_mq, (B, Lq, 1)) > 0.1).astype(jnp.float32)
    d_pos_mask = (jax.random.uniform(k_mp, (B, Lk, 1)) > 0.1).astype(jnp.float32)
    d_neg_mask = (jax.random.uniform(k_mn, (B, Lk, 1)) > 0.1).astype(jnp.float32)

    # emb_mod(.) — plain-JAX gather outside the kernel.
    q_emb = jnp.take(emb_table, q_ids, axis=0)
    d_pos_emb = jnp.take(emb_table, d_pos_ids, axis=0)
    d_neg_emb = jnp.take(emb_table, d_neg_ids, axis=0)

    # Single fused kernel call for both document branches.
    out_pos, out_neg = multi_head_attention(q_emb, d_pos_emb, d_neg_emb,
                                            q_mask, d_pos_mask, d_neg_mask,
                                            w_trans, w_out, H)
    out_pos, out_neg = jax.block_until_ready((out_pos, out_neg))

    # Sanity check against the pure-JAX f32 reference (kernel uses bf16 MXU operands and an
    # approx reciprocal, so allow a modest tolerance).
    ref_pos, ref_neg = ref_forward(q_emb, d_pos_emb, d_neg_emb,
                                   q_mask, d_pos_mask, d_neg_mask, w_trans, w_out, H)
    assert out_pos.shape == (B, Lq, D) and out_neg.shape == (B, Lq, D)
    assert jnp.allclose(out_pos, ref_pos, atol=2e-2, rtol=2e-2), (
        float(jnp.max(jnp.abs(out_pos - ref_pos))))
    assert jnp.allclose(out_neg, ref_neg, atol=2e-2, rtol=2e-2), (
        float(jnp.max(jnp.abs(out_neg - ref_neg))))

    print("KERNEL_OK")
</pallas_src>

<mosaic_0001>
module attributes {stable_mosaic.version = 11 : i64} {
  func.func @mha_kernel(%arg0: i32, %arg1: i32, %arg2: memref<1x8x32xbf16, #tpu.memory_space<vmem>>, %arg3: memref<1x8x1xbf16, #tpu.memory_space<vmem>>, %arg4: memref<1x1x16x32xbf16, #tpu.memory_space<vmem>>, %arg5: memref<1x1x16x1xbf16, #tpu.memory_space<vmem>>, %arg6: memref<32x32xbf16, #tpu.memory_space<vmem>>, %arg7: memref<32x32xbf16, #tpu.memory_space<vmem>>, %arg8: memref<32x32xbf16, #tpu.memory_space<vmem>>, %arg9: memref<1x1x8x32xf32, #tpu.memory_space<vmem>>) attributes {dimension_semantics = [#tpu.dimension_semantics<parallel>, #tpu.dimension_semantics<parallel>], iteration_bounds = array<i64: 2, 2>, scalar_prefetch = 0 : i64, scratch_operands = 0 : i64, tpu.core_type = #tpu.core_type<tc>, window_params = [{transform_indices = @transform_0, window_bounds = array<i64: 1, 8, 32>}, {transform_indices = @transform_1, window_bounds = array<i64: 1, 8, 1>}, {transform_indices = @transform_2, window_bounds = array<i64: 1, 1, 16, 32>}, {transform_indices = @transform_3, window_bounds = array<i64: 1, 1, 16, 1>}, {pipeline_mode = #tpu.pipeline_mode<synchronous>, transform_indices = @transform_4, window_bounds = array<i64: 32, 32>}, {pipeline_mode = #tpu.pipeline_mode<synchronous>, transform_indices = @transform_5, window_bounds = array<i64: 32, 32>}, {pipeline_mode = #tpu.pipeline_mode<synchronous>, transform_indices = @transform_6, window_bounds = array<i64: 32, 32>}, {transform_indices = @transform_7, window_bounds = array<i64: 1, 1, 8, 32>}]} {
    %c0 = arith.constant 0 : index
    %c0_0 = arith.constant 0 : index
    %c0_1 = arith.constant 0 : index
    %0 = vector.load %arg2[%c0, %c0_0, %c0_1] : memref<1x8x32xbf16, #tpu.memory_space<vmem>>, vector<1x8x32xbf16>
    %1 = vector.shape_cast %0 : vector<1x8x32xbf16> to vector<8x32xbf16>
    %c0_2 = arith.constant 0 : index
    %c0_3 = arith.constant 0 : index
    %c0_4 = arith.constant 0 : index
    %2 = vector.load %arg3[%c0_2, %c0_3, %c0_4] : memref<1x8x1xbf16, #tpu.memory_space<vmem>>, vector<1x8x1xbf16>
    %3 = vector.shape_cast %2 : vector<1x8x1xbf16> to vector<8x1xbf16>
    %4 = vector.broadcast %3 : vector<8x1xbf16> to vector<8x32xbf16>
    %5 = arith.mulf %1, %4 : vector<8x32xbf16>
    %c0_5 = arith.constant 0 : index
    %c0_6 = arith.constant 0 : index
    %c0_7 = arith.constant 0 : index
    %c0_8 = arith.constant 0 : index
    %6 = vector.load %arg4[%c0_5, %c0_6, %c0_7, %c0_8] : memref<1x1x16x32xbf16, #tpu.memory_space<vmem>>, vector<1x1x16x32xbf16>
    %7 = vector.shape_cast %6 : vector<1x1x16x32xbf16> to vector<16x32xbf16>
    %c0_9 = arith.constant 0 : index
    %c0_10 = arith.constant 0 : index
    %c0_11 = arith.constant 0 : index
    %c0_12 = arith.constant 0 : index
    %8 = vector.load %arg5[%c0_9, %c0_10, %c0_11, %c0_12] : memref<1x1x16x1xbf16, #tpu.memory_space<vmem>>, vector<1x1x16x1xbf16>
    %9 = vector.shape_cast %8 : vector<1x1x16x1xbf16> to vector<16x1xbf16>
    %10 = vector.broadcast %9 : vector<16x1xbf16> to vector<16x32xbf16>
    %11 = arith.mulf %7, %10 : vector<16x32xbf16>
    %c0_13 = arith.constant 0 : index
    %c0_14 = arith.constant 0 : index
    %12 = vector.load %arg6[%c0_13, %c0_14] : memref<32x32xbf16, #tpu.memory_space<vmem>>, vector<32x32xbf16>
    %c0_15 = arith.constant 0 : index
    %c0_16 = arith.constant 0 : index
    %13 = vector.load %arg7[%c0_15, %c0_16] : memref<32x32xbf16, #tpu.memory_space<vmem>>, vector<32x32xbf16>
    %c0_17 = arith.constant 0 : index
    %c0_18 = arith.constant 0 : index
    %14 = vector.load %arg8[%c0_17, %c0_18] : memref<32x32xbf16, #tpu.memory_space<vmem>>, vector<32x32xbf16>
    "tpu.trace_start"() <{level = 10 : i32, message = "ld,ed->le"}> : () -> ()
    %cst = arith.constant dense<0.000000e+00> : vector<8x32xf32>
    %15 = tpu.matmul %5, %12, %cst {dimension_numbers = #tpu.dot_dimension_numbers<[1], [1], [0], [0], [0, 0, 1, 0], [], []>} : vector<8x32xbf16>, vector<32x32xbf16>, vector<8x32xf32> -> vector<8x32xf32>
    %cst_19 = arith.constant dense<0.000000e+00> : vector<16x32xf32>
    %16 = tpu.matmul %11, %13, %cst_19 {dimension_numbers = #tpu.dot_dimension_numbers<[1], [1], [0], [0], [0, 0, 1, 0], [], []>} : vector<16x32xbf16>, vector<32x32xbf16>, vector<16x32xf32> -> vector<16x32xf32>
    "tpu.trace_stop"() : () -> ()
    %17 = vector.shape_cast %15 : vector<8x32xf32> to vector<8x4x8xf32>
    %18 = tpu.transpose %17, [1, 0, 2] : vector<8x4x8xf32> -> vector<4x8x8xf32>
    %19 = arith.truncf %18 : vector<4x8x8xf32> to vector<4x8x8xbf16>
    %20 = vector.shape_cast %16 : vector<16x32xf32> to vector<16x4x8xf32>
    %21 = tpu.transpose %20, [1, 0, 2] : vector<16x4x8xf32> -> vector<4x16x8xf32>
    %22 = arith.truncf %21 : vector<4x16x8xf32> to vector<4x16x8xbf16>
    "tpu.trace_start"() <{level = 10 : i32, message = "hqe,hke->hqk"}> : () -> ()
    %cst_20 = arith.constant dense<0.000000e+00> : vector<4x8x16xf32>
    %23 = tpu.matmul %19, %22, %cst_20 {dimension_numbers = #tpu.dot_dimension_numbers<[2], [2], [1], [1], [0, 0, 0, 1, 1, 1], [0], [0]>} : vector<4x8x8xbf16>, vector<4x16x8xbf16>, vector<4x8x16xf32> -> vector<4x8x16xf32>
    "tpu.trace_stop"() : () -> ()
    %cst_21 = arith.constant dense<0xFF800000> : vector<4x8xf32>
    %24 = vector.multi_reduction <maximumf>, %23, %cst_21 [2] : vector<4x8x16xf32> to vector<4x8xf32>
    %25 = vector.shape_cast %24 : vector<4x8xf32> to vector<4x8x1xf32>
    %26 = vector.broadcast %25 : vector<4x8x1xf32> to vector<4x8x16xf32>
    %27 = arith.subf %23, %26 : vector<4x8x16xf32>
    %28 = math.exp %27 : vector<4x8x16xf32>
    %cst_22 = arith.constant dense<0.000000e+00> : vector<4x8xf32>
    %29 = vector.multi_reduction <add>, %28, %cst_22 [2] : vector<4x8x16xf32> to vector<4x8xf32>
    %30 = vector.shape_cast %29 : vector<4x8xf32> to vector<4x8x1xf32>
    %31 = tpu.reciprocal %30 {approx = true} : vector<4x8x1xf32> -> vector<4x8x1xf32>
    %32 = vector.broadcast %31 : vector<4x8x1xf32> to vector<4x8x16xf32>
    %33 = arith.mulf %28, %32 : vector<4x8x16xf32>
    %34 = arith.truncf %33 : vector<4x8x16xf32> to vector<4x8x16xbf16>
    "tpu.trace_start"() <{level = 10 : i32, message = "hqk,hke->hqe"}> : () -> ()
    %cst_23 = arith.constant dense<0.000000e+00> : vector<4x8x8xf32>
    %35 = tpu.matmul %34, %22, %cst_23 {dimension_numbers = #tpu.dot_dimension_numbers<[2], [1], [1], [2], [0, 0, 0, 1, 1, 2], [0], [0]>} : vector<4x8x16xbf16>, vector<4x16x8xbf16>, vector<4x8x8xf32> -> vector<4x8x8xf32>
    "tpu.trace_stop"() : () -> ()
    %36 = tpu.transpose %35, [1, 0, 2] : vector<4x8x8xf32> -> vector<8x4x8xf32>
    %37 = vector.shape_cast %36 : vector<8x4x8xf32> to vector<8x32xf32>
    %38 = arith.truncf %37 : vector<8x32xf32> to vector<8x32xbf16>
    "tpu.trace_start"() <{level = 10 : i32, message = "qd,jd->qj"}> : () -> ()
    %cst_24 = arith.constant dense<0.000000e+00> : vector<8x32xf32>
    %39 = tpu.matmul %38, %14, %cst_24 {dimension_numbers = #tpu.dot_dimension_numbers<[1], [1], [0], [0], [0, 0, 1, 0], [], []>} : vector<8x32xbf16>, vector<32x32xbf16>, vector<8x32xf32> -> vector<8x32xf32>
    "tpu.trace_stop"() : () -> ()
    %c0_25 = arith.constant 0 : index
    %c0_26 = arith.constant 0 : index
    %c0_27 = arith.constant 0 : index
    %c0_28 = arith.constant 0 : index
    %40 = vector.load %arg9[%c0_25, %c0_26, %c0_27, %c0_28] : memref<1x1x8x32xf32, #tpu.memory_space<vmem>>, vector<1x1x8x32xf32>
    %41 = vector.shape_cast %40 : vector<1x1x8x32xf32> to vector<8x32xf32>
    %42 = vector.shape_cast %39 : vector<8x32xf32> to vector<1x1x8x32xf32>
    tpu.vector_store %arg9[%c0_25, %c0_26, %c0_27, %c0_28], %42 {strides = array<i32>} : memref<1x1x8x32xf32, #tpu.memory_space<vmem>>, vector<1x1x8x32xf32>,
    return
  }
  func.func @transform_0(%arg0: i32, %arg1: i32) -> (i32, i32, i32) {
    %c0_i32 = arith.constant 0 : i32
    %c0_i32_0 = arith.constant 0 : i32
    %c0_i32_1 = arith.constant 0 : i32
    return %arg0, %c0_i32, %c0_i32_0 : i32, i32, i32
  }
  func.func @transform_1(%arg0: i32, %arg1: i32) -> (i32, i32, i32) {
    %c0_i32 = arith.constant 0 : i32
    %c0_i32_0 = arith.constant 0 : i32
    %c0_i32_1 = arith.constant 0 : i32
    return %arg0, %c0_i32, %c0_i32_0 : i32, i32, i32
  }
  func.func @transform_2(%arg0: i32, %arg1: i32) -> (i32, i32, i32, i32) {
    %c0_i32 = arith.constant 0 : i32
    %c0_i32_0 = arith.constant 0 : i32
    %c0_i32_1 = arith.constant 0 : i32
    return %arg1, %arg0, %c0_i32, %c0_i32_0 : i32, i32, i32, i32
  }
  func.func @transform_3(%arg0: i32, %arg1: i32) -> (i32, i32, i32, i32) {
    %c0_i32 = arith.constant 0 : i32
    %c0_i32_0 = arith.constant 0 : i32
    %c0_i32_1 = arith.constant 0 : i32
    return %arg1, %arg0, %c0_i32, %c0_i32_0 : i32, i32, i32, i32
  }
  func.func @transform_4(%arg0: i32, %arg1: i32) -> (i32, i32) {
    %c0_i32 = arith.constant 0 : i32
    %c0_i32_0 = arith.constant 0 : i32
    %c0_i32_1 = arith.constant 0 : i32
    return %c0_i32, %c0_i32_0 : i32, i32
  }
  func.func @transform_5(%arg0: i32, %arg1: i32) -> (i32, i32) {
    %c0_i32 = arith.constant 0 : i32
    %c0_i32_0 = arith.constant 0 : i32
    %c0_i32_1 = arith.constant 0 : i32
    return %c0_i32, %c0_i32_0 : i32, i32
  }
  func.func @transform_6(%arg0: i32, %arg1: i32) -> (i32, i32) {
    %c0_i32 = arith.constant 0 : i32
    %c0_i32_0 = arith.constant 0 : i32
    %c0_i32_1 = arith.constant 0 : i32
    return %c0_i32, %c0_i32_0 : i32, i32
  }
  func.func @transform_7(%arg0: i32, %arg1: i32) -> (i32, i32, i32, i32) {
    %c0_i32 = arith.constant 0 : i32
    %c0_i32_0 = arith.constant 0 : i32
    %c0_i32_1 = arith.constant 0 : i32
    return %arg1, %arg0, %c0_i32, %c0_i32_0 : i32, i32, i32, i32
  }
}

</mosaic_0001>

<llo_original>
// kernel: tpu_custom_call.1
$region0: #{tpu_custom_call.1}
  #allocation0 [shape = 'u32[]', space=smem, size = 0x4, offset = 0x4, fixed_abs, tag = 'smem constant byte address 0x4 - core index']
  #allocation1 [shape = 'u32[144,128]{1,0:T(1,128)}', space=vmem, size = 0x12000, scoped, tag = 'internal scratch']
  %s0 = inlined_call_operand.hbm [shape: bf16[2,8,32], index: 0, kind: input, shape index: {}]
  %s1 = inlined_call_operand.vmem [shape: bf16[2,8,1], index: 1, kind: input, shape index: {}]
  %s2 = inlined_call_operand.vmem [shape: bf16[2,2,16,32], index: 2, kind: input, shape index: {}]
  %s3 = inlined_call_operand.vmem [shape: bf16[2,2,16,1], index: 3, kind: input, shape index: {}]
  %s4 = inlined_call_operand.vmem [shape: bf16[32,32], index: 4, kind: input, shape index: {}]
  %s5 = inlined_call_operand.hbm [shape: bf16[32,32], index: 5, kind: input, shape index: {}]
  %s6 = inlined_call_operand.hbm [shape: bf16[32,32], index: 6, kind: input, shape index: {}]
  %s7 = inlined_call_operand.hbm [shape: f32[2,2,8,32], index: 7, kind: output, shape index: {}]
  %s8 = sld [smem:[#allocation0]]
  $region73: #{tpu_custom_call.1} parent=0
    _
  %s10 = ssub.s32 1, %s8
  %s11 = scalar_select 0, %s10, %s8
  $region1: #{tpu_custom_call.1} parent=0
    #allocation2 [shape = 'u8[4096]{0}', space=vmem, size = 0x1000, scoped, tag = 'input window, operand 0']
    #allocation3 [shape = 's32[2]{0}', space=sflag, size = 0x8, scoped, tag = 'scoped memory for tpu_custom_call.1']
    #allocation4 [shape = 's32[2]{0}', space=sflag, size = 0x8, scoped, tag = 'scoped memory for tpu_custom_call.1']
    #allocation5 [shape = 'u8[8192]{0}', space=vmem, size = 0x2000, scoped, tag = 'input window, operand 5, single buffered']
    #allocation6 [shape = 's32[1]{0}', space=sflag, size = 0x4, scoped, tag = 'scoped memory for tpu_custom_call.1']
    #allocation7 [shape = 'u8[8192]{0}', space=vmem, size = 0x2000, scoped, tag = 'input window, operand 6, single buffered']
    #allocation8 [shape = 'u8[8192]{0}', space=vmem, size = 0x2000, scoped, tag = 'output window, operand 0']
    %12 = vsyncpa [#allocation3], 0
    %s13 = scalar_lea.sflag [#allocation3], 1
    %14 = vsyncpa %s13, 0
    %15 = vsyncpa [#allocation6], 0
    %16 = vsyncpa [#allocation4], 0
    %s17 = scalar_lea.sflag [#allocation4], 1
    %18 = vsyncpa %s17, 0
    loop: start=0, step=1, limit=6
    $region2: #{tpu_custom_call.1} parent=1 // loop_pre_header
      _
    $region3: #{tpu_custom_call.1} parent=1 // loop_header
      %s20 = sphi 0, %s24
      %p21 = scmp.ge.s32.totalorder %s20, 6
      %s27 = sphi 0, %s39
      %s28 = sphi 0, %s35
      %s29 = sphi 0, %s27
      %s30 = sphi 0, %s28
      %s31 = sphi 0, %s29
      %s32 = sphi 0, %s30
      %s42 = sphi 0, %s44
      %s45 = sphi 0, %s42
      %s46 = sphi 0, %s45
      %s62 = sphi 0, %s46
      %s68 = sphi 0, %s70
      %s71 = sphi 0, %s68
      %s72 = sphi 0, %s71
      %s88 = sphi 0, %s72
      %s96 = sphi 0, %s98
      %s99 = sphi 0, %s96
      %s100 = sphi 0, %s99
      %s116 = sphi 0, %s100
      %s124 = sphi 0, %s126
      %s127 = sphi 0, %s124
      %s128 = sphi 0, %s127
      %s144 = sphi 0, %s128
      %s148 = sphi 0, %s148
      %s150 = sphi 0, %s148
      %s151 = sphi 0, %s150
      %s165 = sphi 0, %s151
      %s169 = sphi 0, %s169
      %s171 = sphi 0, %s169
      %s172 = sphi 0, %s171
      %s186 = sphi 0, %s172
      %s190 = sphi 0, %s190
      %s192 = sphi 0, %s190
      %s193 = sphi 0, %s192
      %s207 = sphi 0, %s193
      %s215 = sphi 0, %s217
      %s218 = sphi 0, %s215
      %s219 = sphi 0, %s218
      %s235 = sphi 0, %s219
    $region4: #{tpu_custom_call.1} parent=1 // loop_header_branch
      %23 = sbr.rel (%p21) target = $region8
    $region5: #{tpu_custom_call.1} parent=1 // loop_body
      %s25 = ssub.s32 %s20, 1
      %s26 = ssub.s32 %s20, 2
      %s33 = sadd.s32 1, %s28
      %p34 = scmp.ge.s32.totalorder %s33, 2
      %s35 = scalar_select %p34, 0, %s33
      %s36 = sadd.s32 1, %s27
      %s37 = scalar_select %p34, %s36, %s27
      %p38 = scmp.ge.s32.totalorder %s37, 2
      %s39 = scalar_select %p38, 0, %s37
      %s40 = ssub.s32 %s27, %s39
      %p41 = scmp.eq.s32.totalorder %s40, 0
      %s43 = sadd.s32 %s42, 1
      %s44 = scalar_select %p41, %s42, %s43
      %p47 = pneg %p41
      %p48 = scmp.eq.s32.totalorder %s20, 3
      %p49 = por %p47, %p48
      %p50 = scmp.ne.s32.totalorder %s42, %s45
      %p51 = scmp.eq.s32.totalorder %s20, 0
      %p52 = por %p50, %p51
      %p53 = scmp.ne.s32.totalorder %s42, %s45
      %p54 = scmp.eq.s32.totalorder %s25, 3
      %p55 = por %p53, %p54
      %p56 = scmp.ne.s32.totalorder %s45, %s46
      %p57 = scmp.eq.s32.totalorder %s25, 0
      %p58 = por %p56, %p57
      %p59 = scmp.ne.s32.totalorder %s45, %s46
      %p60 = scmp.eq.s32.totalorder %s26, 3
      %p61 = por %p59, %p60
      %p63 = scmp.ne.s32.totalorder %s46, %s62
      %p64 = scmp.eq.s32.totalorder %s26, 0
      %p65 = por %p63, %p64
      %s66 = ssub.s32 %s27, %s39
      %p67 = scmp.eq.s32.totalorder %s66, 0
      %s69 = sadd.s32 %s68, 1
      %s70 = scalar_select %p67, %s68, %s69
      %p73 = pneg %p67
      %p74 = scmp.eq.s32.totalorder %s20, 3
      %p75 = por %p73, %p74
      %p76 = scmp.ne.s32.totalorder %s68, %s71
      %p77 = scmp.eq.s32.totalorder %s20, 0
      %p78 = por %p76, %p77
      %p79 = scmp.ne.s32.totalorder %s68, %s71
      %p80 = scmp.eq.s32.totalorder %s25, 3
      %p81 = por %p79, %p80
      %p82 = scmp.ne.s32.totalorder %s71, %s72
      %p83 = scmp.eq.s32.totalorder %s25, 0
      %p84 = por %p82, %p83
      %p85 = scmp.ne.s32.totalorder %s71, %s72
      %p86 = scmp.eq.s32.totalorder %s26, 3
      %p87 = por %p85, %p86
      %p89 = scmp.ne.s32.totalorder %s72, %s88
      %p90 = scmp.eq.s32.totalorder %s26, 0
      %p91 = por %p89, %p90
      %s92 = ssub.s32 %s28, %s35
      %s93 = ssub.s32 %s27, %s39
      %s94 = sor.u32 %s92, %s93
      %p95 = scmp.eq.s32.totalorder %s94, 0
      %s97 = sadd.s32 %s96, 1
      %s98 = scalar_select %p95, %s96, %s97
      %p101 = pneg %p95
      %p102 = scmp.eq.s32.totalorder %s20, 3
      %p103 = por %p101, %p102
      %p104 = scmp.ne.s32.totalorder %s96, %s99
      %p105 = scmp.eq.s32.totalorder %s20, 0
      %p106 = por %p104, %p105
      %p107 = scmp.ne.s32.totalorder %s96, %s99
      %p108 = scmp.eq.s32.totalorder %s25, 3
      %p109 = por %p107, %p108
      %p110 = scmp.ne.s32.totalorder %s99, %s100
      %p111 = scmp.eq.s32.totalorder %s25, 0
      %p112 = por %p110, %p111
      %p113 = scmp.ne.s32.totalorder %s99, %s100
      %p114 = scmp.eq.s32.totalorder %s26, 3
      %p115 = por %p113, %p114
      %p117 = scmp.ne.s32.totalorder %s100, %s116
      %p118 = scmp.eq.s32.totalorder %s26, 0
      %p119 = por %p117, %p118
      %s120 = ssub.s32 %s28, %s35
      %s121 = ssub.s32 %s27, %s39
      %s122 = sor.u32 %s120, %s121
      %p123 = scmp.eq.s32.totalorder %s122, 0
      %s125 = sadd.s32 %s124, 1
      %s126 = scalar_select %p123, %s124, %s125
      %p129 = pneg %p123
      %p130 = scmp.eq.s32.totalorder %s20, 3
      %p131 = por %p129, %p130
      %p132 = scmp.ne.s32.totalorder %s124, %s127
      %p133 = scmp.eq.s32.totalorder %s20, 0
      %p134 = por %p132, %p133
      %p135 = scmp.ne.s32.totalorder %s124, %s127
      %p136 = scmp.eq.s32.totalorder %s25, 3
      %p137 = por %p135, %p136
      %p138 = scmp.ne.s32.totalorder %s127, %s128
      %p139 = scmp.eq.s32.totalorder %s25, 0
      %p140 = por %p138, %p139
      %p141 = scmp.ne.s32.totalorder %s127, %s128
      %p142 = scmp.eq.s32.totalorder %s26, 3
      %p143 = por %p141, %p142
      %p145 = scmp.ne.s32.totalorder %s128, %s144
      %p146 = scmp.eq.s32.totalorder %s26, 0
      %p147 = por %p145, %p146
      %s149 = sadd.s32 %s148, 1
      %p152 = scmp.eq.s32.totalorder %s20, 3
      %p153 = scmp.ne.s32.totalorder %s148, %s150
      %p154 = scmp.eq.s32.totalorder %s20, 0
      %p155 = por %p153, %p154
      %p156 = scmp.ne.s32.totalorder %s148, %s150
      %p157 = scmp.eq.s32.totalorder %s25, 3
      %p158 = por %p156, %p157
      %p159 = scmp.ne.s32.totalorder %s150, %s151
      %p160 = scmp.eq.s32.totalorder %s25, 0
      %p161 = por %p159, %p160
      %p162 = scmp.ne.s32.totalorder %s150, %s151
      %p163 = scmp.eq.s32.totalorder %s26, 3
      %p164 = por %p162, %p163
      %p166 = scmp.ne.s32.totalorder %s151, %s165
      %p167 = scmp.eq.s32.totalorder %s26, 0
      %p168 = por %p166, %p167
      %s170 = sadd.s32 %s169, 1
      %p173 = scmp.eq.s32.totalorder %s20, 3
      %p174 = scmp.ne.s32.totalorder %s169, %s171
      %p175 = scmp.eq.s32.totalorder %s20, 0
      %p176 = por %p174, %p175
      %p177 = scmp.ne.s32.totalorder %s169, %s171
      %p178 = scmp.eq.s32.totalorder %s25, 3
      %p179 = por %p177, %p178
      %p180 = scmp.ne.s32.totalorder %s171, %s172
      %p181 = scmp.eq.s32.totalorder %s25, 0
      %p182 = por %p180, %p181
      %p183 = scmp.ne.s32.totalorder %s171, %s172
      %p184 = scmp.eq.s32.totalorder %s26, 3
      %p185 = por %p183, %p184
      %p187 = scmp.ne.s32.totalorder %s172, %s186
      %p188 = scmp.eq.s32.totalorder %s26, 0
      %p189 = por %p187, %p188
      %s191 = sadd.s32 %s190, 1
      %p194 = scmp.eq.s32.totalorder %s20, 3
      %p195 = scmp.ne.s32.totalorder %s190, %s192
      %p196 = scmp.eq.s32.totalorder %s20, 0
      %p197 = por %p195, %p196
      %p198 = scmp.ne.s32.totalorder %s190, %s192
      %p199 = scmp.eq.s32.totalorder %s25, 3
      %p200 = por %p198, %p199
      %p201 = scmp.ne.s32.totalorder %s192, %s193
      %p202 = scmp.eq.s32.totalorder %s25, 0
      %p203 = por %p201, %p202
      %p204 = scmp.ne.s32.totalorder %s192, %s193
      %p205 = scmp.eq.s32.totalorder %s26, 3
      %p206 = por %p204, %p205
      %p208 = scmp.ne.s32.totalorder %s193, %s207
      %p209 = scmp.eq.s32.totalorder %s26, 0
      %p210 = por %p208, %p209
      %s211 = ssub.s32 %s28, %s35
      %s212 = ssub.s32 %s27, %s39
      %s213 = sor.u32 %s211, %s212
      %p214 = scmp.eq.s32.totalorder %s213, 0
      %s216 = sadd.s32 %s215, 1
      %s217 = scalar_select %p214, %s215, %s216
      %p220 = pneg %p214
      %p221 = scmp.eq.s32.totalorder %s20, 3
      %p222 = por %p220, %p221
      %p223 = scmp.ne.s32.totalorder %s215, %s218
      %p224 = scmp.eq.s32.totalorder %s20, 0
      %p225 = por %p223, %p224
      %p226 = scmp.ne.s32.totalorder %s215, %s218
      %p227 = scmp.eq.s32.totalorder %s25, 3
      %p228 = por %p226, %p227
      %p229 = scmp.ne.s32.totalorder %s218, %s219
      %p230 = scmp.eq.s32.totalorder %s25, 0
      %p231 = por %p229, %p230
      %p232 = scmp.ne.s32.totalorder %s218, %s219
      %p233 = scmp.eq.s32.totalorder %s26, 3
      %p234 = por %p232, %p233
      %p236 = scmp.ne.s32.totalorder %s219, %s235
      %p237 = scmp.eq.s32.totalorder %s26, 0
      %p238 = por %p236, %p237
      %p239 = scmp.le.s32.totalorder 1, %s20
      %p240 = scmp.lt.s32.totalorder %s20, 5
      %p241 = pnand %p239, %p240
      %p242 = pneg %p241
      // Predicated region
      $region9: #{tpu_custom_call.1} parent=5 // pred_check
        _
      $region10: #{tpu_custom_call.1} parent=5 // pred_check_branch
        %244 = sbr.rel (%p241) target = $region12
      $region11: #{tpu_custom_call.1} parent=5 // pred_region
        %s245 = ssub.s32 %s20, 1
        // Predicated region
        $region13: #{tpu_custom_call.1} parent=11 // pred_check
          %p246 = pneg %p161
        $region14: #{tpu_custom_call.1} parent=11 // pred_check_branch
          %248 = sbr.rel (%p246) target = $region16
        $region15: #{tpu_custom_call.1} parent=11 // pred_region
          _
        $region16: #{tpu_custom_call.1} parent=11 // pred_fallthru
          _
        // Predicated region
        $region17: #{tpu_custom_call.1} parent=11 // pred_check
          %p249 = pneg %p182
        $region18: #{tpu_custom_call.1} parent=11 // pred_check_branch
          %251 = sbr.rel (%p249) target = $region20
        $region19: #{tpu_custom_call.1} parent=11 // pred_region
          %s253 = ssub.s32 256, 256
          %254 = vsyncadd [#allocation6], %s253
          %s255 = sshll.u32 [#allocation5], 4
          %s256 = int_to_ptr.vmem [resolvable:$true] %s255
          %261 = dma.hbm_to_vmem [thread:$0]  %s5, 256, %s256, [#allocation6], 64, 64, 4
        $region20: #{tpu_custom_call.1} parent=11 // pred_fallthru
          _
        // Predicated region
        $region21: #{tpu_custom_call.1} parent=11 // pred_check
          %p262 = pneg %p203
        $region22: #{tpu_custom_call.1} parent=11 // pred_check_branch
          %264 = sbr.rel (%p262) target = $region24
        $region23: #{tpu_custom_call.1} parent=11 // pred_region
          %s266 = ssub.s32 256, 256
          %267 = vsyncadd [#allocation6], %s266
          %s268 = sshll.u32 [#allocation7], 4
          %s269 = int_to_ptr.vmem [resolvable:$true] %s268
          %274 = dma.hbm_to_vmem [thread:$0]  %s6, 256, %s269, [#allocation6], 64, 64, 4
        $region24: #{tpu_custom_call.1} parent=11 // pred_fallthru
          _
      $region12: #{tpu_custom_call.1} parent=5 // pred_fallthru
        _
      %p275 = scmp.lt.s32.totalorder %s20, 4
      // Predicated region
      $region25: #{tpu_custom_call.1} parent=5 // pred_check
        %p276 = pneg %p275
      $region26: #{tpu_custom_call.1} parent=5 // pred_check_branch
        %278 = sbr.rel (%p276) target = $region28
      $region27: #{tpu_custom_call.1} parent=5 // pred_region
        // Predicated region
        $region29: #{tpu_custom_call.1} parent=27 // pred_check
          %p279 = pneg %p52
        $region30: #{tpu_custom_call.1} parent=27 // pred_check_branch
          %281 = sbr.rel (%p279) target = $region32
        $region31: #{tpu_custom_call.1} parent=27 // pred_region
          %s282 = sand.u32 %s42, 1
          %s283 = scalar_lea.sflag [#allocation3], %s282
          %s284 = sand.u32 %s42, 1
          %s285 = smul.addr %s284, 4
          %s286 = scalar_lea.vmem [#allocation2], %s285
          %s288 = ssub.s32 64, 64
          %289 = vsyncadd %s283, %s288
          %s290 = smul.addr %s27, 64
          %s291 = scalar_lea.hbm %s0, %s290
          %s293 = sshll.u32 %s286, 4
          %s294 = int_to_ptr.vmem [resolvable:$true] %s293
          %296 = dma.hbm_to_vmem [thread:$0]  %s291, 64, %s294, %s283
        $region32: #{tpu_custom_call.1} parent=27 // pred_fallthru
          _
        // Predicated region
        $region33: #{tpu_custom_call.1} parent=27 // pred_check
          %p297 = pneg %p78
        $region34: #{tpu_custom_call.1} parent=27 // pred_check_branch
          %299 = sbr.rel (%p297) target = $region36
        $region35: #{tpu_custom_call.1} parent=27 // pred_region
          %p300 = scmp.lt.s32.totalorder %s27, 1
          %s301 = scalar_select %p300, %s27, 1
          %s302 = smul.addr %s301, 4
          %s303 = scalar_lea.vmem %s1, %s302
        $region36: #{tpu_custom_call.1} parent=27 // pred_fallthru
          _
        // Predicated region
        $region37: #{tpu_custom_call.1} parent=27 // pred_check
          %p304 = pneg %p106
        $region38: #{tpu_custom_call.1} parent=27 // pred_check_branch
          %306 = sbr.rel (%p304) target = $region40
        $region39: #{tpu_custom_call.1} parent=27 // pred_region
          %p307 = scmp.lt.s32.totalorder %s28, 1
          %s308 = scalar_select %p307, %s28, 1
          %p309 = scmp.lt.s32.totalorder %s27, 1
          %s310 = scalar_select %p309, %s27, 1
          %s311 = smul.addr %s310, 2
          %s312 = smul.addr %s308, 4
          %s313 = sadd.s32 %s311, %s312
          %s314 = smul.addr %s313, 4
          %s315 = scalar_lea.vmem %s2, %s314
        $region40: #{tpu_custom_call.1} parent=27 // pred_fallthru
          _
        // Predicated region
        $region41: #{tpu_custom_call.1} parent=27 // pred_check
          %p316 = pneg %p134
        $region42: #{tpu_custom_call.1} parent=27 // pred_check_branch
          %318 = sbr.rel (%p316) target = $region44
        $region43: #{tpu_custom_call.1} parent=27 // pred_region
          %p319 = scmp.lt.s32.totalorder %s28, 1
          %s320 = scalar_select %p319, %s28, 1
          %p321 = scmp.lt.s32.totalorder %s27, 1
          %s322 = scalar_select %p321, %s27, 1
          %s323 = smul.addr %s322, 2
          %s324 = smul.addr %s320, 4
          %s325 = sadd.s32 %s323, %s324
          %s326 = smul.addr %s325, 4
          %s327 = scalar_lea.vmem %s3, %s326
        $region44: #{tpu_custom_call.1} parent=27 // pred_fallthru
          _
      $region28: #{tpu_custom_call.1} parent=5 // pred_fallthru
        _
      %p328 = scmp.le.s32.totalorder 1, %s20
      %p329 = scmp.lt.s32.totalorder %s20, 5
      %p330 = pnand %p328, %p329
      %p331 = pneg %p330
      // Predicated region
      $region45: #{tpu_custom_call.1} parent=5 // pred_check
        _
      $region46: #{tpu_custom_call.1} parent=5 // pred_check_branch
        %333 = sbr.rel (%p330) target = $region48
      $region47: #{tpu_custom_call.1} parent=5 // pred_region
        %s334 = ssub.s32 %s20, 1
        %s335 = sand.u32 %s45, 1
        %s336 = scalar_lea.sflag [#allocation3], %s335
        %s337 = sand.u32 %s45, 1
        %s338 = smul.addr %s337, 4
        %s339 = scalar_lea.vmem [#allocation2], %s338
        // Predicated region
        $region49: #{tpu_custom_call.1} parent=47 // pred_check
          %p340 = pneg %p58
        $region50: #{tpu_custom_call.1} parent=47 // pred_check_branch
          %342 = sbr.rel (%p340) target = $region52
        $region51: #{tpu_custom_call.1} parent=47 // pred_region
          %343 = dma.done %s336, 64
        $region52: #{tpu_custom_call.1} parent=47 // pred_fallthru
          _
        // Predicated region
        $region53: #{tpu_custom_call.1} parent=47 // pred_check
          %p344 = pneg %p182
        $region54: #{tpu_custom_call.1} parent=47 // pred_check_branch
          %346 = sbr.rel (%p344) target = $region56
        $region55: #{tpu_custom_call.1} parent=47 // pred_region
          %347 = dma.done [#allocation6], 256
        $region56: #{tpu_custom_call.1} parent=47 // pred_fallthru
          _
        // Predicated region
        $region57: #{tpu_custom_call.1} parent=47 // pred_check
          %p348 = pneg %p203
        $region58: #{tpu_custom_call.1} parent=47 // pred_check_branch
          %350 = sbr.rel (%p348) target = $region60
        $region59: #{tpu_custom_call.1} parent=47 // pred_region
          %351 = dma.done [#allocation6], 256
        $region60: #{tpu_custom_call.1} parent=47 // pred_fallthru
          _
        %s352 = sand.u32 %s45, 1
        %s353 = scalar_lea.sflag [#allocation3], %s352
        %s354 = sand.u32 %s45, 1
        %s355 = smul.addr %s354, 4
        %s356 = scalar_lea.vmem [#allocation2], %s355
        %p357 = pneg %p58
        %p358 = pneg %p55
        %p359 = scmp.lt.s32.totalorder %s29, 1
        %s360 = scalar_select %p359, %s29, 1
        %s361 = smul.addr %s360, 4
        %s362 = scalar_lea.vmem %s1, %s361
        %p363 = pneg %p84
        %p364 = pneg %p81
        %p365 = scmp.lt.s32.totalorder %s30, 1
        %s366 = scalar_select %p365, %s30, 1
        %p367 = scmp.lt.s32.totalorder %s29, 1
        %s368 = scalar_select %p367, %s29, 1
        %s369 = smul.addr %s368, 2
        %s370 = smul.addr %s366, 4
        %s371 = sadd.s32 %s369, %s370
        %s372 = smul.addr %s371, 4
        %s373 = scalar_lea.vmem %s2, %s372
        %p374 = pneg %p112
        %p375 = pneg %p109
        %p376 = scmp.lt.s32.totalorder %s30, 1
        %s377 = scalar_select %p376, %s30, 1
        %p378 = scmp.lt.s32.totalorder %s29, 1
        %s379 = scalar_select %p378, %s29, 1
        %s380 = smul.addr %s379, 2
        %s381 = smul.addr %s377, 4
        %s382 = sadd.s32 %s380, %s381
        %s383 = smul.addr %s382, 4
        %s384 = scalar_lea.vmem %s3, %s383
        %p385 = pneg %p140
        %p386 = pneg %p137
        %p387 = pneg %p161
        %p388 = pneg %p158
        %p389 = pneg %p182
        %p390 = pneg %p179
        %p391 = pneg %p203
        %p392 = pneg %p200
        %p393 = pneg %p231
        %p394 = pneg %p228
        %s395 = sand.u32 %s218, 1
        %s396 = scalar_lea.sflag [#allocation4], %s395
        %s397 = sand.u32 %s218, 1
        %s398 = smul.addr %s397, 8
        %s399 = scalar_lea.vmem [#allocation8], %s398
        %p400 = scmp.lt.s32.totalorder %s29, 1
        %s401 = scalar_select %p400, %s29, 1
        %s402 = smul.addr %s401, 4
        %s403 = scalar_lea.vmem %s1, %s402
        %p404 = scmp.lt.s32.totalorder %s30, 1
        %s405 = scalar_select %p404, %s30, 1
        %p406 = scmp.lt.s32.totalorder %s29, 1
        %s407 = scalar_select %p406, %s29, 1
        %s408 = smul.addr %s407, 2
        %s409 = smul.addr %s405, 4
        %s410 = sadd.s32 %s408, %s409
        %s411 = smul.addr %s410, 4
        %s412 = scalar_lea.vmem %s2, %s411
        %p413 = scmp.lt.s32.totalorder %s30, 1
        %s414 = scalar_select %p413, %s30, 1
        %p415 = scmp.lt.s32.totalorder %s29, 1
        %s416 = scalar_select %p415, %s29, 1
        %s417 = smul.addr %s416, 2
        %s418 = smul.addr %s414, 4
        %s419 = sadd.s32 %s417, %s418
        %s420 = smul.addr %s419, 4
        %s421 = scalar_lea.vmem %s3, %s420
        %v423 = vld [vmem:[%s339] sm:$0xf]
        %v424 = vld [vmem:[%s403] sm:$0xf]
        %426 = vset.pattern.permute.xlu0 0
        %427 = vperm.xlu0 %426, %v424
        %v428 = vpop.permute.xlu0 %427
        %v431 = vunpack.c.l.s4 839922192
        %v432 = vunpack.c.0.s8 %v431
        %v433 = vlaneseq
        %v434 = vshrl.u32 %v433, 7
        %v435 = vsub.s32 %v432, %v434
        %v436 = vrot.slane %v428, %v435
        %v437 = vmul.bf16 %v423, %v436
        %v438 = vld [vmem:[%s412] sm:$0xf]
        %v439 = vld [vmem:[%s412 + $0x4] sm:$0xf]
        %v440 = vld [vmem:[%s421] sm:$0xf]
        %v441 = vld [vmem:[%s421 + $0x4] sm:$0xf]
        %443 = vset.pattern.permute.xlu0 0
        %444 = vperm.xlu0 %443, %v440
        %v445 = vpop.permute.xlu0 %444
        %v448 = vunpack.c.l.s4 839922192
        %v449 = vunpack.c.0.s8 %v448
        %v450 = vlaneseq
        %v451 = vshrl.u32 %v450, 7
        %v452 = vsub.s32 %v449, %v451
        %v453 = vrot.slane %v445, %v452
        %455 = vset.pattern.permute.xlu0 0
        %456 = vperm.xlu0 %455, %v441
        %v457 = vpop.permute.xlu0 %456
        %v460 = vunpack.c.l.s4 839922192
        %v461 = vunpack.c.0.s8 %v460
        %v462 = vlaneseq
        %v463 = vshrl.u32 %v462, 7
        %v464 = vsub.s32 %v461, %v463
        %v465 = vrot.slane %v457, %v464
        %v466 = vmul.bf16 %v438, %v453
        %v467 = vmul.bf16 %v439, %v465
        %v468 = vld [vmem:[%s4] sm:$0xf]
        %v469 = vld [vmem:[%s4 + $0x4] sm:$0xf]
        %v470 = vld [vmem:[%s4 + $0x8] sm:$0xf]
        %v471 = vld [vmem:[%s4 + $0xc] sm:$0xf]
        %v472 = vld [vmem:[#allocation5] sm:$0xf]
        %v473 = vld [vmem:[#allocation5 + $0x4] sm:$0xf]
        %v474 = vld [vmem:[#allocation5 + $0x8] sm:$0xf]
        %v475 = vld [vmem:[#allocation5 + $0xc] sm:$0xf]
        %v476 = vld [vmem:[#allocation7] sm:$0xf]
        %v477 = vld [vmem:[#allocation7 + $0x4] sm:$0xf]
        %v478 = vld [vmem:[#allocation7 + $0x8] sm:$0xf]
        %v479 = vld [vmem:[#allocation7 + $0xc] sm:$0xf]
        %v484 = vunpack.c.l.b16 %v468
        %v485 = vunpack.c.l.b16 %v469
        %v486 = vunpack.c.l.b16 %v470
        %v487 = vunpack.c.l.b16 %v471
        %v488 = vpack.c.b16 %v485, %v484
        %v489 = vpack.c.b16 %v487, %v486
        %vm490 = vcmask 261120
        %v492 = vsel %vm490, %v437, 0
        %v495 = vsel %vm490, %v488, 0
        %v498 = vsel %vm490, %v489, 0
        %500 = vmatprep.subr.bf16.mxu0 0
        %501 = vmatpush1.bf16.xpose.msra.mxu0 0
        %502 = vmatprep.subr.bf16.mxu0 0
        %503 = vmatpush1.bf16.xpose.msra.mxu0 0
        %504 = vmatprep.subr.bf16.mxu0 0
        %505 = vmatpush1.bf16.xpose.msra.mxu0 0
        %506 = vmatprep.subr.bf16.mxu0 0
        %507 = vmatpush1.bf16.xpose.msra.mxu0 0
        %508 = vmatprep.subr.bf16.mxu0 0
        %509 = vmatpush1.bf16.xpose.msra.mxu0 0
        %510 = vmatprep.subr.bf16.mxu0 0
        %511 = vmatpush1.bf16.xpose.msra.mxu0 0
        %512 = vmatprep.subr.bf16.mxu0 0
        %513 = vmatpush1.bf16.xpose.msra.mxu0 %v498
        %514 = vmatprep.subr.bf16.mxu0 0
        %515 = vmatpush1.bf16.xpose.msra.mxu0 %v495
        %516 = vmatprep.subr.bf16.mxu0 0
        %517 = vmatpush2.bf16.xpose.msra.mxu0 0
        %518 = vmatprep.subr.bf16.mxu0 0
        %519 = vmatpush2.bf16.xpose.msra.mxu0 0
        %520 = vmatprep.subr.bf16.mxu0 0
        %521 = vmatpush2.bf16.xpose.msra.mxu0 0
        %522 = vmatprep.subr.bf16.mxu0 0
        %523 = vmatpush2.bf16.xpose.msra.mxu0 0
        %524 = vmatprep.subr.bf16.mxu0 0
        %525 = vmatpush2.bf16.xpose.msra.mxu0 0
        %526 = vmatprep.subr.bf16.mxu0 0
        %527 = vmatpush2.bf16.xpose.msra.mxu0 0
        %528 = vmatprep.subr.bf16.mxu0 0
        %529 = vmatpush2.bf16.xpose.msra.mxu0 0
        %530 = vmatprep.subr.bf16.mxu0 0
        %531 = vmatpush2.bf16.xpose.msra.mxu0 0
        %532 = vmatprep.mubr.bf16.mxu0 0
        %533 = vmatmul.mubr.bf16.gmra.mxu0 %v492
        %v534 = vpop.f32.mrf.mxu0
        %v535 = vadd.f32 0.0, %v534
        %v536 = vpop.f32.mrf.mxu0
        %v537 = vpop.f32.mrf.mxu0
        %v538 = vpop.f32.mrf.mxu0
        %539 = vdwg.mxu0
        %v542 = vunpack.c.l.b16 %v466
        %v543 = vunpack.c.l.b16 %v467
        %v544 = vpack.c.b16 %v543, %v542
        %v549 = vunpack.c.l.b16 %v472
        %v550 = vunpack.c.l.b16 %v473
        %v551 = vunpack.c.l.b16 %v474
        %v552 = vunpack.c.l.b16 %v475
        %v553 = vpack.c.b16 %v550, %v549
        %v554 = vpack.c.b16 %v552, %v551
        %v556 = vsel %vm490, %v544, 0
        %v559 = vsel %vm490, %v553, 0
        %v562 = vsel %vm490, %v554, 0
        %564 = vmatprep.subr.bf16.mxu0 0
        %565 = vmatpush1.bf16.xpose.msra.mxu0 0
        %566 = vmatprep.subr.bf16.mxu0 0
        %567 = vmatpush1.bf16.xpose.msra.mxu0 0
        %568 = vmatprep.subr.bf16.mxu0 0
        %569 = vmatpush1.bf16.xpose.msra.mxu0 0
        %570 = vmatprep.subr.bf16.mxu0 0
        %571 = vmatpush1.bf16.xpose.msra.mxu0 0
        %572 = vmatprep.subr.bf16.mxu0 0
        %573 = vmatpush1.bf16.xpose.msra.mxu0 0
        %574 = vmatprep.subr.bf16.mxu0 0
        %575 = vmatpush1.bf16.xpose.msra.mxu0 0
        %576 = vmatprep.subr.bf16.mxu0 0
        %577 = vmatpush1.bf16.xpose.msra.mxu0 %v562
        %578 = vmatprep.subr.bf16.mxu0 0
        %579 = vmatpush1.bf16.xpose.msra.mxu0 %v559
        %580 = vmatprep.subr.bf16.mxu0 0
        %581 = vmatpush2.bf16.xpose.msra.mxu0 0
        %582 = vmatprep.subr.bf16.mxu0 0
        %583 = vmatpush2.bf16.xpose.msra.mxu0 0
        %584 = vmatprep.subr.bf16.mxu0 0
        %585 = vmatpush2.bf16.xpose.msra.mxu0 0
        %586 = vmatprep.subr.bf16.mxu0 0
        %587 = vmatpush2.bf16.xpose.msra.mxu0 0
        %588 = vmatprep.subr.bf16.mxu0 0
        %589 = vmatpush2.bf16.xpose.msra.mxu0 0
        %590 = vmatprep.subr.bf16.mxu0 0
        %591 = vmatpush2.bf16.xpose.msra.mxu0 0
        %592 = vmatprep.subr.bf16.mxu0 0
        %593 = vmatpush2.bf16.xpose.msra.mxu0 0
        %594 = vmatprep.subr.bf16.mxu0 0
        %595 = vmatpush2.bf16.xpose.msra.mxu0 0
        %596 = vmatprep.mubr.bf16.mxu0 0
        %597 = vmatmul.mubr.bf16.gmra.mxu0 %v556
        %v598 = vpop.f32.mrf.mxu0
        %v599 = vadd.f32 0.0, %v598
        %v600 = vpop.f32.mrf.mxu0
        %v601 = vpop.f32.mrf.mxu0
        %v602 = vadd.f32 0.0, %v601
        %v603 = vpop.f32.mrf.mxu0
        %604 = vdwg.mxu0
        %606 = vrot.lane.b32.xlu0 %v535, 120
        %v607 = vpop.permute.xlu0 %606
        %609 = vrot.lane.b32.xlu0 %v535, 112
        %v610 = vpop.permute.xlu0 %609
        %612 = vrot.lane.b32.xlu0 %v535, 104
        %v613 = vpop.permute.xlu0 %612
        %v615 = vcombine.low %v535, %v610
        %v616 = vcombine.high %v535, %v610
        %v618 = vunpack.c.l.s4 1983009808
        %v619 = vunpack.c.0.s8 %v618
        %v620 = vlaneseq
        %v621 = vshrl.u32 %v620, 7
        %v622 = vsub.s32 %v619, %v621
        %v623 = vrot.slane %v615, %v622
        %v625 = vunpack.c.l.s4 1983009808
        %v626 = vunpack.c.0.s8 %v625
        %v627 = vlaneseq
        %v628 = vshrl.u32 %v627, 7
        %v629 = vsub.s32 %v626, %v628
        %v630 = vrot.slane %v616, %v629
        %v631 = vcombine.low %v607, %v613
        %v632 = vcombine.high %v607, %v613
        %v634 = vunpack.c.l.s4 1983009808
        %v635 = vunpack.c.0.s8 %v634
        %v636 = vlaneseq
        %v637 = vshrl.u32 %v636, 7
        %v638 = vsub.s32 %v635, %v637
        %v639 = vrot.slane %v631, %v638
        %v641 = vunpack.c.l.s4 1983009808
        %v642 = vunpack.c.0.s8 %v641
        %v643 = vlaneseq
        %v644 = vshrl.u32 %v643, 7
        %v645 = vsub.s32 %v642, %v644
        %v646 = vrot.slane %v632, %v645
        %v647 = vcombine.low %v623, %v639
        %v648 = vcombine.high %v623, %v639
        %v650 = vunpack.c.l.s4 1934713408
        %v651 = vunpack.c.0.s8 %v650
        %v652 = vlaneseq
        %v653 = vshrl.u32 %v652, 7
        %v654 = vsub.s32 %v651, %v653
        %v655 = vrot.slane %v647, %v654
        %v657 = vunpack.c.l.s4 1934713408
        %v658 = vunpack.c.0.s8 %v657
        %v659 = vlaneseq
        %v660 = vshrl.u32 %v659, 7
        %v661 = vsub.s32 %v658, %v660
        %v662 = vrot.slane %v648, %v661
        %v663 = vcombine.low %v630, %v646
        %v664 = vcombine.high %v630, %v646
        %v666 = vunpack.c.l.s4 1934713408
        %v667 = vunpack.c.0.s8 %v666
        %v668 = vlaneseq
        %v669 = vshrl.u32 %v668, 7
        %v670 = vsub.s32 %v667, %v669
        %v671 = vrot.slane %v663, %v670
        %v673 = vunpack.c.l.s4 1934713408
        %v674 = vunpack.c.0.s8 %v673
        %v675 = vlaneseq
        %v676 = vshrl.u32 %v675, 7
        %v677 = vsub.s32 %v674, %v676
        %v678 = vrot.slane %v664, %v677
        %v679 = vcombine.high %v655, 0.0
        %v680 = vcombine.high %v662, 0.0
        %v681 = vcombine.high %v671, 0.0
        %v682 = vcombine.high %v678, 0.0
        %v683 = vcombine.low %v655, %v662
        %v685 = vunpack.c.l.s4 1983009808
        %v686 = vunpack.c.0.s8 %v685
        %v687 = vlaneseq
        %v688 = vshrl.u32 %v687, 7
        %v689 = vsub.s32 %v686, %v688
        %v690 = vrot.slane %v683, %v689
        %v691 = vcombine.low %v679, %v680
        %v693 = vunpack.c.l.s4 1983009808
        %v694 = vunpack.c.0.s8 %v693
        %v695 = vlaneseq
        %v696 = vshrl.u32 %v695, 7
        %v697 = vsub.s32 %v694, %v696
        %v698 = vrot.slane %v691, %v697
        %v699 = vcombine.low %v671, %v678
        %v701 = vunpack.c.l.s4 1983009808
        %v702 = vunpack.c.0.s8 %v701
        %v703 = vlaneseq
        %v704 = vshrl.u32 %v703, 7
        %v705 = vsub.s32 %v702, %v704
        %v706 = vrot.slane %v699, %v705
        %v707 = vcombine.low %v681, %v682
        %v709 = vunpack.c.l.s4 1983009808
        %v710 = vunpack.c.0.s8 %v709
        %v711 = vlaneseq
        %v712 = vshrl.u32 %v711, 7
        %v713 = vsub.s32 %v710, %v712
        %v714 = vrot.slane %v707, %v713
        %v715 = vcombine.low %v690, %v698
        %v716 = vcombine.high %v690, %v698
        %v718 = vunpack.c.l.s4 1934713408
        %v719 = vunpack.c.0.s8 %v718
        %v720 = vlaneseq
        %v721 = vshrl.u32 %v720, 7
        %v722 = vsub.s32 %v719, %v721
        %v723 = vrot.slane %v715, %v722
        %v725 = vunpack.c.l.s4 1934713408
        %v726 = vunpack.c.0.s8 %v725
        %v727 = vlaneseq
        %v728 = vshrl.u32 %v727, 7
        %v729 = vsub.s32 %v726, %v728
        %v730 = vrot.slane %v716, %v729
        %v731 = vcombine.low %v706, %v714
        %v732 = vcombine.high %v706, %v714
        %v734 = vunpack.c.l.s4 1934713408
        %v735 = vunpack.c.0.s8 %v734
        %v736 = vlaneseq
        %v737 = vshrl.u32 %v736, 7
        %v738 = vsub.s32 %v735, %v737
        %v739 = vrot.slane %v731, %v738
        %v741 = vunpack.c.l.s4 1934713408
        %v742 = vunpack.c.0.s8 %v741
        %v743 = vlaneseq
        %v744 = vshrl.u32 %v743, 7
        %v745 = vsub.s32 %v742, %v744
        %v746 = vrot.slane %v732, %v745
        %v747 = vcombine.low %v723, %v739
        %v748 = vcombine.high %v723, %v739
        %v749 = vcombine.low %v730, %v746
        %v750 = vcombine.high %v730, %v746
        %v751 = vpack.c.bf16 %v747, %v747
        %v752 = vpack.c.bf16 %v748, %v748
        %v753 = vpack.c.bf16 %v749, %v749
        %v754 = vpack.c.bf16 %v750, %v750
        %757 = vrot.lane.b32.xlu0 %v599, 120
        %v758 = vpop.permute.xlu0 %757
        %759 = vrot.lane.b32.xlu0 %v602, 120
        %v760 = vpop.permute.xlu0 %759
        %763 = vrot.lane.b32.xlu0 %v599, 112
        %v764 = vpop.permute.xlu0 %763
        %765 = vrot.lane.b32.xlu0 %v602, 112
        %v766 = vpop.permute.xlu0 %765
        %769 = vrot.lane.b32.xlu0 %v599, 104
        %v770 = vpop.permute.xlu0 %769
        %771 = vrot.lane.b32.xlu0 %v602, 104
        %v772 = vpop.permute.xlu0 %771
        %v775 = vcombine.low %v599, %v764
        %v776 = vcombine.high %v599, %v764
        %v778 = vunpack.c.l.s4 1983009808
        %v779 = vunpack.c.0.s8 %v778
        %v780 = vlaneseq
        %v781 = vshrl.u32 %v780, 7
        %v782 = vsub.s32 %v779, %v781
        %v783 = vrot.slane %v775, %v782
        %v785 = vunpack.c.l.s4 1983009808
        %v786 = vunpack.c.0.s8 %v785
        %v787 = vlaneseq
        %v788 = vshrl.u32 %v787, 7
        %v789 = vsub.s32 %v786, %v788
        %v790 = vrot.slane %v776, %v789
        %v791 = vcombine.low %v758, %v770
        %v792 = vcombine.high %v758, %v770
        %v794 = vunpack.c.l.s4 1983009808
        %v795 = vunpack.c.0.s8 %v794
        %v796 = vlaneseq
        %v797 = vshrl.u32 %v796, 7
        %v798 = vsub.s32 %v795, %v797
        %v799 = vrot.slane %v791, %v798
        %v801 = vunpack.c.l.s4 1983009808
        %v802 = vunpack.c.0.s8 %v801
        %v803 = vlaneseq
        %v804 = vshrl.u32 %v803, 7
        %v805 = vsub.s32 %v802, %v804
        %v806 = vrot.slane %v792, %v805
        %v807 = vcombine.low %v783, %v799
        %v808 = vcombine.high %v783, %v799
        %v810 = vunpack.c.l.s4 1934713408
        %v811 = vunpack.c.0.s8 %v810
        %v812 = vlaneseq
        %v813 = vshrl.u32 %v812, 7
        %v814 = vsub.s32 %v811, %v813
        %v815 = vrot.slane %v807, %v814
        %v817 = vunpack.c.l.s4 1934713408
        %v818 = vunpack.c.0.s8 %v817
        %v819 = vlaneseq
        %v820 = vshrl.u32 %v819, 7
        %v821 = vsub.s32 %v818, %v820
        %v822 = vrot.slane %v808, %v821
        %v823 = vcombine.low %v790, %v806
        %v824 = vcombine.high %v790, %v806
        %v826 = vunpack.c.l.s4 1934713408
        %v827 = vunpack.c.0.s8 %v826
        %v828 = vlaneseq
        %v829 = vshrl.u32 %v828, 7
        %v830 = vsub.s32 %v827, %v829
        %v831 = vrot.slane %v823, %v830
        %v833 = vunpack.c.l.s4 1934713408
        %v834 = vunpack.c.0.s8 %v833
        %v835 = vlaneseq
        %v836 = vshrl.u32 %v835, 7
        %v837 = vsub.s32 %v834, %v836
        %v838 = vrot.slane %v824, %v837
        %v839 = vcombine.high %v815, 0.0
        %v840 = vcombine.high %v822, 0.0
        %v841 = vcombine.high %v831, 0.0
        %v842 = vcombine.high %v838, 0.0
        %v843 = vcombine.low %v602, %v766
        %v844 = vcombine.high %v602, %v766
        %v846 = vunpack.c.l.s4 1983009808
        %v847 = vunpack.c.0.s8 %v846
        %v848 = vlaneseq
        %v849 = vshrl.u32 %v848, 7
        %v850 = vsub.s32 %v847, %v849
        %v851 = vrot.slane %v843, %v850
        %v853 = vunpack.c.l.s4 1983009808
        %v854 = vunpack.c.0.s8 %v853
        %v855 = vlaneseq
        %v856 = vshrl.u32 %v855, 7
        %v857 = vsub.s32 %v854, %v856
        %v858 = vrot.slane %v844, %v857
        %v859 = vcombine.low %v760, %v772
        %v860 = vcombine.high %v760, %v772
        %v862 = vunpack.c.l.s4 1983009808
        %v863 = vunpack.c.0.s8 %v862
        %v864 = vlaneseq
        %v865 = vshrl.u32 %v864, 7
        %v866 = vsub.s32 %v863, %v865
        %v867 = vrot.slane %v859, %v866
        %v869 = vunpack.c.l.s4 1983009808
        %v870 = vunpack.c.0.s8 %v869
        %v871 = vlaneseq
        %v872 = vshrl.u32 %v871, 7
        %v873 = vsub.s32 %v870, %v872
        %v874 = vrot.slane %v860, %v873
        %v875 = vcombine.low %v851, %v867
        %v876 = vcombine.high %v851, %v867
        %v878 = vunpack.c.l.s4 1934713408
        %v879 = vunpack.c.0.s8 %v878
        %v880 = vlaneseq
        %v881 = vshrl.u32 %v880, 7
        %v882 = vsub.s32 %v879, %v881
        %v883 = vrot.slane %v875, %v882
        %v885 = vunpack.c.l.s4 1934713408
        %v886 = vunpack.c.0.s8 %v885
        %v887 = vlaneseq
        %v888 = vshrl.u32 %v887, 7
        %v889 = vsub.s32 %v886, %v888
        %v890 = vrot.slane %v876, %v889
        %v891 = vcombine.low %v858, %v874
        %v892 = vcombine.high %v858, %v874
        %v894 = vunpack.c.l.s4 1934713408
        %v895 = vunpack.c.0.s8 %v894
        %v896 = vlaneseq
        %v897 = vshrl.u32 %v896, 7
        %v898 = vsub.s32 %v895, %v897
        %v899 = vrot.slane %v891, %v898
        %v901 = vunpack.c.l.s4 1934713408
        %v902 = vunpack.c.0.s8 %v901
        %v903 = vlaneseq
        %v904 = vshrl.u32 %v903, 7
        %v905 = vsub.s32 %v902, %v904
        %v906 = vrot.slane %v892, %v905
        %v907 = vcombine.high %v883, 0.0
        %v908 = vcombine.high %v890, 0.0
        %v909 = vcombine.high %v899, 0.0
        %v910 = vcombine.high %v906, 0.0
        %v911 = vcombine.low %v815, %v822
        %v913 = vunpack.c.l.s4 1983009808
        %v914 = vunpack.c.0.s8 %v913
        %v915 = vlaneseq
        %v916 = vshrl.u32 %v915, 7
        %v917 = vsub.s32 %v914, %v916
        %v918 = vrot.slane %v911, %v917
        %v919 = vcombine.low %v839, %v840
        %v921 = vunpack.c.l.s4 1983009808
        %v922 = vunpack.c.0.s8 %v921
        %v923 = vlaneseq
        %v924 = vshrl.u32 %v923, 7
        %v925 = vsub.s32 %v922, %v924
        %v926 = vrot.slane %v919, %v925
        %v927 = vcombine.low %v831, %v838
        %v929 = vunpack.c.l.s4 1983009808
        %v930 = vunpack.c.0.s8 %v929
        %v931 = vlaneseq
        %v932 = vshrl.u32 %v931, 7
        %v933 = vsub.s32 %v930, %v932
        %v934 = vrot.slane %v927, %v933
        %v935 = vcombine.low %v841, %v842
        %v937 = vunpack.c.l.s4 1983009808
        %v938 = vunpack.c.0.s8 %v937
        %v939 = vlaneseq
        %v940 = vshrl.u32 %v939, 7
        %v941 = vsub.s32 %v938, %v940
        %v942 = vrot.slane %v935, %v941
        %v943 = vcombine.low %v918, %v926
        %v944 = vcombine.high %v918, %v926
        %v946 = vunpack.c.l.s4 1934713408
        %v947 = vunpack.c.0.s8 %v946
        %v948 = vlaneseq
        %v949 = vshrl.u32 %v948, 7
        %v950 = vsub.s32 %v947, %v949
        %v951 = vrot.slane %v943, %v950
        %v953 = vunpack.c.l.s4 1934713408
        %v954 = vunpack.c.0.s8 %v953
        %v955 = vlaneseq
        %v956 = vshrl.u32 %v955, 7
        %v957 = vsub.s32 %v954, %v956
        %v958 = vrot.slane %v944, %v957
        %v959 = vcombine.low %v934, %v942
        %v960 = vcombine.high %v934, %v942
        %v962 = vunpack.c.l.s4 1934713408
        %v963 = vunpack.c.0.s8 %v962
        %v964 = vlaneseq
        %v965 = vshrl.u32 %v964, 7
        %v966 = vsub.s32 %v963, %v965
        %v967 = vrot.slane %v959, %v966
        %v969 = vunpack.c.l.s4 1934713408
        %v970 = vunpack.c.0.s8 %v969
        %v971 = vlaneseq
        %v972 = vshrl.u32 %v971, 7
        %v973 = vsub.s32 %v970, %v972
        %v974 = vrot.slane %v960, %v973
        %v975 = vcombine.low %v951, %v967
        %v976 = vcombine.high %v951, %v967
        %v977 = vcombine.low %v958, %v974
        %v978 = vcombine.high %v958, %v974
        %v979 = vcombine.low %v883, %v890
        %v981 = vunpack.c.l.s4 1983009808
        %v982 = vunpack.c.0.s8 %v981
        %v983 = vlaneseq
        %v984 = vshrl.u32 %v983, 7
        %v985 = vsub.s32 %v982, %v984
        %v986 = vrot.slane %v979, %v985
        %v987 = vcombine.low %v907, %v908
        %v989 = vunpack.c.l.s4 1983009808
        %v990 = vunpack.c.0.s8 %v989
        %v991 = vlaneseq
        %v992 = vshrl.u32 %v991, 7
        %v993 = vsub.s32 %v990, %v992
        %v994 = vrot.slane %v987, %v993
        %v995 = vcombine.low %v899, %v906
        %v997 = vunpack.c.l.s4 1983009808
        %v998 = vunpack.c.0.s8 %v997
        %v999 = vlaneseq
        %v1000 = vshrl.u32 %v999, 7
        %v1001 = vsub.s32 %v998, %v1000
        %v1002 = vrot.slane %v995, %v1001
        %v1003 = vcombine.low %v909, %v910
        %v1005 = vunpack.c.l.s4 1983009808
        %v1006 = vunpack.c.0.s8 %v1005
        %v1007 = vlaneseq
        %v1008 = vshrl.u32 %v1007, 7
        %v1009 = vsub.s32 %v1006, %v1008
        %v1010 = vrot.slane %v1003, %v1009
        %v1011 = vcombine.low %v986, %v994
        %v1012 = vcombine.high %v986, %v994
        %v1014 = vunpack.c.l.s4 1934713408
        %v1015 = vunpack.c.0.s8 %v1014
        %v1016 = vlaneseq
        %v1017 = vshrl.u32 %v1016, 7
        %v1018 = vsub.s32 %v1015, %v1017
        %v1019 = vrot.slane %v1011, %v1018
        %v1021 = vunpack.c.l.s4 1934713408
        %v1022 = vunpack.c.0.s8 %v1021
        %v1023 = vlaneseq
        %v1024 = vshrl.u32 %v1023, 7
        %v1025 = vsub.s32 %v1022, %v1024
        %v1026 = vrot.slane %v1012, %v1025
        %v1027 = vcombine.low %v1002, %v1010
        %v1028 = vcombine.high %v1002, %v1010
        %v1030 = vunpack.c.l.s4 1934713408
        %v1031 = vunpack.c.0.s8 %v1030
        %v1032 = vlaneseq
        %v1033 = vshrl.u32 %v1032, 7
        %v1034 = vsub.s32 %v1031, %v1033
        %v1035 = vrot.slane %v1027, %v1034
        %v1037 = vunpack.c.l.s4 1934713408
        %v1038 = vunpack.c.0.s8 %v1037
        %v1039 = vlaneseq
        %v1040 = vshrl.u32 %v1039, 7
        %v1041 = vsub.s32 %v1038, %v1040
        %v1042 = vrot.slane %v1028, %v1041
        %v1043 = vcombine.low %v1019, %v1035
        %v1044 = vcombine.high %v1019, %v1035
        %v1045 = vcombine.low %v1026, %v1042
        %v1046 = vcombine.high %v1026, %v1042
        %v1047 = vpack.c.bf16 %v1043, %v975
        %v1048 = vpack.c.bf16 %v1044, %v976
        %v1049 = vpack.c.bf16 %v1045, %v977
        %v1050 = vpack.c.bf16 %v1046, %v978
        %vm1051 = vcmask 64512
        %v1053 = vsel %vm1051, %v751, 0
        %v1056 = vsel %vm1051, %v1047, 0
        %1058 = vmatprep.subr.bf16.mxu0 0
        %1059 = vmatpush1.bf16.xpose.msra.mxu0 0
        %1060 = vmatprep.subr.bf16.mxu0 0
        %1061 = vmatpush1.bf16.xpose.msra.mxu0 0
        %1062 = vmatprep.subr.bf16.mxu0 0
        %1063 = vmatpush1.bf16.xpose.msra.mxu0 0
        %1064 = vmatprep.subr.bf16.mxu0 0
        %1065 = vmatpush1.bf16.xpose.msra.mxu0 0
        %1066 = vmatprep.subr.bf16.mxu0 0
        %1067 = vmatpush1.bf16.xpose.msra.mxu0 0
        %1068 = vmatprep.subr.bf16.mxu0 0
        %1069 = vmatpush1.bf16.xpose.msra.mxu0 0
        %1070 = vmatprep.subr.bf16.mxu0 0
        %1071 = vmatpush1.bf16.xpose.msra.mxu0 0
        %1072 = vmatprep.subr.bf16.mxu0 0
        %1073 = vmatpush1.bf16.xpose.msra.mxu0 %v1056
        %1074 = vmatprep.subr.bf16.mxu0 0
        %1075 = vmatpush2.bf16.xpose.msra.mxu0 0
        %1076 = vmatprep.subr.bf16.mxu0 0
        %1077 = vmatpush2.bf16.xpose.msra.mxu0 0
        %1078 = vmatprep.subr.bf16.mxu0 0
        %1079 = vmatpush2.bf16.xpose.msra.mxu0 0
        %1080 = vmatprep.subr.bf16.mxu0 0
        %1081 = vmatpush2.bf16.xpose.msra.mxu0 0
        %1082 = vmatprep.subr.bf16.mxu0 0
        %1083 = vmatpush2.bf16.xpose.msra.mxu0 0
        %1084 = vmatprep.subr.bf16.mxu0 0
        %1085 = vmatpush2.bf16.xpose.msra.mxu0 0
        %1086 = vmatprep.subr.bf16.mxu0 0
        %1087 = vmatpush2.bf16.xpose.msra.mxu0 0
        %1088 = vmatprep.subr.bf16.mxu0 0
        %1089 = vmatpush2.bf16.xpose.msra.mxu0 0
        %1090 = vmatprep.mubr.bf16.mxu0 0
        %1091 = vmatmul.mubr.bf16.gmra.mxu0 %v1053
        %v1092 = vpop.f32.mrf.mxu0
        %v1093 = vadd.f32 0.0, %v1092
        %v1094 = vpop.f32.mrf.mxu0
        %v1095 = vpop.f32.mrf.mxu0
        %v1096 = vpop.f32.mrf.mxu0
        %1097 = vdwg.mxu0
        %v1099 = vsel %vm1051, %v752, 0
        %v1102 = vsel %vm1051, %v1048, 0
        %1104 = vmatprep.subr.bf16.mxu0 0
        %1105 = vmatpush1.bf16.xpose.msra.mxu0 0
        %1106 = vmatprep.subr.bf16.mxu0 0
        %1107 = vmatpush1.bf16.xpose.msra.mxu0 0
        %1108 = vmatprep.subr.bf16.mxu0 0
        %1109 = vmatpush1.bf16.xpose.msra.mxu0 0
        %1110 = vmatprep.subr.bf16.mxu0 0
        %1111 = vmatpush1.bf16.xpose.msra.mxu0 0
        %1112 = vmatprep.subr.bf16.mxu0 0
        %1113 = vmatpush1.bf16.xpose.msra.mxu0 0
        %1114 = vmatprep.subr.bf16.mxu0 0
        %1115 = vmatpush1.bf16.xpose.msra.mxu0 0
        %1116 = vmatprep.subr.bf16.mxu0 0
        %1117 = vmatpush1.bf16.xpose.msra.mxu0 0
        %1118 = vmatprep.subr.bf16.mxu0 0
        %1119 = vmatpush1.bf16.xpose.msra.mxu0 %v1102
        %1120 = vmatprep.subr.bf16.mxu0 0
        %1121 = vmatpush2.bf16.xpose.msra.mxu0 0
        %1122 = vmatprep.subr.bf16.mxu0 0
        %1123 = vmatpush2.bf16.xpose.msra.mxu0 0
        %1124 = vmatprep.subr.bf16.mxu0 0
        %1125 = vmatpush2.bf16.xpose.msra.mxu0 0
        %1126 = vmatprep.subr.bf16.mxu0 0
        %1127 = vmatpush2.bf16.xpose.msra.mxu0 0
        %1128 = vmatprep.subr.bf16.mxu0 0
        %1129 = vmatpush2.bf16.xpose.msra.mxu0 0
        %1130 = vmatprep.subr.bf16.mxu0 0
        %1131 = vmatpush2.bf16.xpose.msra.mxu0 0
        %1132 = vmatprep.subr.bf16.mxu0 0
        %1133 = vmatpush2.bf16.xpose.msra.mxu0 0
        %1134 = vmatprep.subr.bf16.mxu0 0
        %1135 = vmatpush2.bf16.xpose.msra.mxu0 0
        %1136 = vmatprep.mubr.bf16.mxu0 0
        %1137 = vmatmul.mubr.bf16.gmra.mxu0 %v1099
        %v1138 = vpop.f32.mrf.mxu0
        %v1139 = vadd.f32 0.0, %v1138
        %v1140 = vpop.f32.mrf.mxu0
        %v1141 = vpop.f32.mrf.mxu0
        %v1142 = vpop.f32.mrf.mxu0
        %1143 = vdwg.mxu0
        %v1145 = vsel %vm1051, %v753, 0
        %v1148 = vsel %vm1051, %v1049, 0
        %1150 = vmatprep.subr.bf16.mxu0 0
        %1151 = vmatpush1.bf16.xpose.msra.mxu0 0
        %1152 = vmatprep.subr.bf16.mxu0 0
        %1153 = vmatpush1.bf16.xpose.msra.mxu0 0
        %1154 = vmatprep.subr.bf16.mxu0 0
        %1155 = vmatpush1.bf16.xpose.msra.mxu0 0
        %1156 = vmatprep.subr.bf16.mxu0 0
        %1157 = vmatpush1.bf16.xpose.msra.mxu0 0
        %1158 = vmatprep.subr.bf16.mxu0 0
        %1159 = vmatpush1.bf16.xpose.msra.mxu0 0
        %1160 = vmatprep.subr.bf16.mxu0 0
        %1161 = vmatpush1.bf16.xpose.msra.mxu0 0
        %1162 = vmatprep.subr.bf16.mxu0 0
        %1163 = vmatpush1.bf16.xpose.msra.mxu0 0
        %1164 = vmatprep.subr.bf16.mxu0 0
        %1165 = vmatpush1.bf16.xpose.msra.mxu0 %v1148
        %1166 = vmatprep.subr.bf16.mxu0 0
        %1167 = vmatpush2.bf16.xpose.msra.mxu0 0
        %1168 = vmatprep.subr.bf16.mxu0 0
        %1169 = vmatpush2.bf16.xpose.msra.mxu0 0
        %1170 = vmatprep.subr.bf16.mxu0 0
        %1171 = vmatpush2.bf16.xpose.msra.mxu0 0
        %1172 = vmatprep.subr.bf16.mxu0 0
        %1173 = vmatpush2.bf16.xpose.msra.mxu0 0
        %1174 = vmatprep.subr.bf16.mxu0 0
        %1175 = vmatpush2.bf16.xpose.msra.mxu0 0
        %1176 = vmatprep.subr.bf16.mxu0 0
        %1177 = vmatpush2.bf16.xpose.msra.mxu0 0
        %1178 = vmatprep.subr.bf16.mxu0 0
        %1179 = vmatpush2.bf16.xpose.msra.mxu0 0
        %1180 = vmatprep.subr.bf16.mxu0 0
        %1181 = vmatpush2.bf16.xpose.msra.mxu0 0
        %1182 = vmatprep.mubr.bf16.mxu0 0
        %1183 = vmatmul.mubr.bf16.gmra.mxu0 %v1145
        %v1184 = vpop.f32.mrf.mxu0
        %v1185 = vadd.f32 0.0, %v1184
        %v1186 = vpop.f32.mrf.mxu0
        %v1187 = vpop.f32.mrf.mxu0
        %v1188 = vpop.f32.mrf.mxu0
        %1189 = vdwg.mxu0
        %v1191 = vsel %vm1051, %v754, 0
        %v1194 = vsel %vm1051, %v1050, 0
        %1196 = vmatprep.subr.bf16.mxu0 0
        %1197 = vmatpush1.bf16.xpose.msra.mxu0 0
        %1198 = vmatprep.subr.bf16.mxu0 0
        %1199 = vmatpush1.bf16.xpose.msra.mxu0 0
        %1200 = vmatprep.subr.bf16.mxu0 0
        %1201 = vmatpush1.bf16.xpose.msra.mxu0 0
        %1202 = vmatprep.subr.bf16.mxu0 0
        %1203 = vmatpush1.bf16.xpose.msra.mxu0 0
        %1204 = vmatprep.subr.bf16.mxu0 0
        %1205 = vmatpush1.bf16.xpose.msra.mxu0 0
        %1206 = vmatprep.subr.bf16.mxu0 0
        %1207 = vmatpush1.bf16.xpose.msra.mxu0 0
        %1208 = vmatprep.subr.bf16.mxu0 0
        %1209 = vmatpush1.bf16.xpose.msra.mxu0 0
        %1210 = vmatprep.subr.bf16.mxu0 0
        %1211 = vmatpush1.bf16.xpose.msra.mxu0 %v1194
        %1212 = vmatprep.subr.bf16.mxu0 0
        %1213 = vmatpush2.bf16.xpose.msra.mxu0 0
        %1214 = vmatprep.subr.bf16.mxu0 0
        %1215 = vmatpush2.bf16.xpose.msra.mxu0 0
        %1216 = vmatprep.subr.bf16.mxu0 0
        %1217 = vmatpush2.bf16.xpose.msra.mxu0 0
        %1218 = vmatprep.subr.bf16.mxu0 0
        %1219 = vmatpush2.bf16.xpose.msra.mxu0 0
        %1220 = vmatprep.subr.bf16.mxu0 0
        %1221 = vmatpush2.bf16.xpose.msra.mxu0 0
        %1222 = vmatprep.subr.bf16.mxu0 0
        %1223 = vmatpush2.bf16.xpose.msra.mxu0 0
        %1224 = vmatprep.subr.bf16.mxu0 0
        %1225 = vmatpush2.bf16.xpose.msra.mxu0 0
        %1226 = vmatprep.subr.bf16.mxu0 0
        %1227 = vmatpush2.bf16.xpose.msra.mxu0 0
        %1228 = vmatprep.mubr.bf16.mxu0 0
        %1229 = vmatmul.mubr.bf16.gmra.mxu0 %v1191
        %v1230 = vpop.f32.mrf.mxu0
        %v1231 = vadd.f32 0.0, %v1230
        %v1232 = vpop.f32.mrf.mxu0
        %v1233 = vpop.f32.mrf.mxu0
        %v1234 = vpop.f32.mrf.mxu0
        %1235 = vdwg.mxu0
        %vm1236 = vcmask 130048
        %v1237 = vsel %vm1236, %v1093, -inf
        %1238 = vmax.xlane.f32.xlu0 %v1237
        %v1239 = vpop.xlane.xlu0 %1238
        %v1240 = vsel %vm1236, %v1139, -inf
        %1241 = vmax.xlane.f32.xlu0 %v1240
        %v1242 = vpop.xlane.xlu0 %1241
        %v1243 = vsel %vm1236, %v1185, -inf
        %1244 = vmax.xlane.f32.xlu0 %v1243
        %v1245 = vpop.xlane.xlu0 %1244
        %v1246 = vsel %vm1236, %v1231, -inf
        %1247 = vmax.xlane.f32.xlu0 %v1246
        %v1248 = vpop.xlane.xlu0 %1247
        %v1249 = vsub.f32 %v1093, %v1239
        %v1250 = vsub.f32 %v1139, %v1242
        %v1251 = vsub.f32 %v1185, %v1245
        %v1252 = vsub.f32 %v1231, %v1248
        %v1253 = vmul.f32 %v1249, 1.442695
        %v1254 = vpow.pop %v1253
        %v1255 = vmul.f32 %v1250, 1.442695
        %v1256 = vpow.pop %v1255
        %v1257 = vmul.f32 %v1251, 1.442695
        %v1258 = vpow.pop %v1257
        %v1259 = vmul.f32 %v1252, 1.442695
        %v1260 = vpow.pop %v1259
        %v1261 = vsel %vm1236, %v1254, 0.0
        %1262 = vadd.xlane.f32.xlu0 %v1261
        %v1263 = vpop.xlane.xlu0 %1262
        %v1264 = vsel %vm1236, %v1256, 0.0
        %1265 = vadd.xlane.f32.xlu0 %v1264
        %v1266 = vpop.xlane.xlu0 %1265
        %v1267 = vsel %vm1236, %v1258, 0.0
        %1268 = vadd.xlane.f32.xlu0 %v1267
        %v1269 = vpop.xlane.xlu0 %1268
        %v1270 = vsel %vm1236, %v1260, 0.0
        %1271 = vadd.xlane.f32.xlu0 %v1270
        %v1272 = vpop.xlane.xlu0 %1271
        %v1273 = vrcp.pop %v1263
        %v1274 = vrcp.pop %v1266
        %v1275 = vrcp.pop %v1269
        %v1276 = vrcp.pop %v1272
        %v1277 = vmul.f32 %v1254, %v1273
        %v1278 = vmul.f32 %v1256, %v1274
        %v1279 = vmul.f32 %v1258, %v1275
        %v1280 = vmul.f32 %v1260, %v1276
        %v1281 = vpack.c.bf16 %v1277, %v1277
        %v1282 = vpack.c.bf16 %v1278, %v1278
        %v1283 = vpack.c.bf16 %v1279, %v1279
        %v1284 = vpack.c.bf16 %v1280, %v1280
        %v1286 = vsel %vm1236, %v1281, 0
        %1288 = vmatprep.subr.bf16.mxu0 0
        %1289 = vmatpush1.bf16.msra.mxu0 0
        %1290 = vmatprep.subr.bf16.mxu0 0
        %1291 = vmatpush1.bf16.msra.mxu0 0
        %1292 = vmatprep.subr.bf16.mxu0 0
        %1293 = vmatpush1.bf16.msra.mxu0 0
        %1294 = vmatprep.subr.bf16.mxu0 0
        %1295 = vmatpush1.bf16.msra.mxu0 0
        %1296 = vmatprep.subr.bf16.mxu0 0
        %1297 = vmatpush1.bf16.msra.mxu0 0
        %1298 = vmatprep.subr.bf16.mxu0 0
        %1299 = vmatpush1.bf16.msra.mxu0 0
        %1300 = vmatprep.subr.bf16.mxu0 0
        %1301 = vmatpush1.bf16.msra.mxu0 0
        %1302 = vmatprep.subr.bf16.mxu0 0
        %1303 = vmatpush1.bf16.msra.mxu0 %v1047
        %1304 = vmatprep.subr.bf16.mxu0 0
        %1305 = vmatpush2.bf16.msra.mxu0 0
        %1306 = vmatprep.subr.bf16.mxu0 0
        %1307 = vmatpush2.bf16.msra.mxu0 0
        %1308 = vmatprep.subr.bf16.mxu0 0
        %1309 = vmatpush2.bf16.msra.mxu0 0
        %1310 = vmatprep.subr.bf16.mxu0 0
        %1311 = vmatpush2.bf16.msra.mxu0 0
        %1312 = vmatprep.subr.bf16.mxu0 0
        %1313 = vmatpush2.bf16.msra.mxu0 0
        %1314 = vmatprep.subr.bf16.mxu0 0
        %1315 = vmatpush2.bf16.msra.mxu0 0
        %1316 = vmatprep.subr.bf16.mxu0 0
        %1317 = vmatpush2.bf16.msra.mxu0 0
        %1318 = vmatprep.subr.bf16.mxu0 0
        %1319 = vmatpush2.bf16.msra.mxu0 0
        %1320 = vmatprep.mubr.bf16.mxu0 0
        %1321 = vmatmul.mubr.bf16.gmra.mxu0 %v1286
        %v1322 = vpop.f32.mrf.mxu0
        %v1323 = vadd.f32 0.0, %v1322
        %v1324 = vpop.f32.mrf.mxu0
        %v1325 = vpop.f32.mrf.mxu0
        %v1326 = vpop.f32.mrf.mxu0
        %1327 = vdwg.mxu0
        %v1329 = vsel %vm1236, %v1282, 0
        %1331 = vmatprep.subr.bf16.mxu0 0
        %1332 = vmatpush1.bf16.msra.mxu0 0
        %1333 = vmatprep.subr.bf16.mxu0 0
        %1334 = vmatpush1.bf16.msra.mxu0 0
        %1335 = vmatprep.subr.bf16.mxu0 0
        %1336 = vmatpush1.bf16.msra.mxu0 0
        %1337 = vmatprep.subr.bf16.mxu0 0
        %1338 = vmatpush1.bf16.msra.mxu0 0
        %1339 = vmatprep.subr.bf16.mxu0 0
        %1340 = vmatpush1.bf16.msra.mxu0 0
        %1341 = vmatprep.subr.bf16.mxu0 0
        %1342 = vmatpush1.bf16.msra.mxu0 0
        %1343 = vmatprep.subr.bf16.mxu0 0
        %1344 = vmatpush1.bf16.msra.mxu0 0
        %1345 = vmatprep.subr.bf16.mxu0 0
        %1346 = vmatpush1.bf16.msra.mxu0 %v1048
        %1347 = vmatprep.subr.bf16.mxu0 0
        %1348 = vmatpush2.bf16.msra.mxu0 0
        %1349 = vmatprep.subr.bf16.mxu0 0
        %1350 = vmatpush2.bf16.msra.mxu0 0
        %1351 = vmatprep.subr.bf16.mxu0 0
        %1352 = vmatpush2.bf16.msra.mxu0 0
        %1353 = vmatprep.subr.bf16.mxu0 0
        %1354 = vmatpush2.bf16.msra.mxu0 0
        %1355 = vmatprep.subr.bf16.mxu0 0
        %1356 = vmatpush2.bf16.msra.mxu0 0
        %1357 = vmatprep.subr.bf16.mxu0 0
        %1358 = vmatpush2.bf16.msra.mxu0 0
        %1359 = vmatprep.subr.bf16.mxu0 0
        %1360 = vmatpush2.bf16.msra.mxu0 0
        %1361 = vmatprep.subr.bf16.mxu0 0
        %1362 = vmatpush2.bf16.msra.mxu0 0
        %1363 = vmatprep.mubr.bf16.mxu0 0
        %1364 = vmatmul.mubr.bf16.gmra.mxu0 %v1329
        %v1365 = vpop.f32.mrf.mxu0
        %v1366 = vadd.f32 0.0, %v1365
        %v1367 = vpop.f32.mrf.mxu0
        %v1368 = vpop.f32.mrf.mxu0
        %v1369 = vpop.f32.mrf.mxu0
        %1370 = vdwg.mxu0
        %v1372 = vsel %vm1236, %v1283, 0
        %1374 = vmatprep.subr.bf16.mxu0 0
        %1375 = vmatpush1.bf16.msra.mxu0 0
        %1376 = vmatprep.subr.bf16.mxu0 0
        %1377 = vmatpush1.bf16.msra.mxu0 0
        %1378 = vmatprep.subr.bf16.mxu0 0
        %1379 = vmatpush1.bf16.msra.mxu0 0
        %1380 = vmatprep.subr.bf16.mxu0 0
        %1381 = vmatpush1.bf16.msra.mxu0 0
        %1382 = vmatprep.subr.bf16.mxu0 0
        %1383 = vmatpush1.bf16.msra.mxu0 0
        %1384 = vmatprep.subr.bf16.mxu0 0
        %1385 = vmatpush1.bf16.msra.mxu0 0
        %1386 = vmatprep.subr.bf16.mxu0 0
        %1387 = vmatpush1.bf16.msra.mxu0 0
        %1388 = vmatprep.subr.bf16.mxu0 0
        %1389 = vmatpush1.bf16.msra.mxu0 %v1049
        %1390 = vmatprep.subr.bf16.mxu0 0
        %1391 = vmatpush2.bf16.msra.mxu0 0
        %1392 = vmatprep.subr.bf16.mxu0 0
        %1393 = vmatpush2.bf16.msra.mxu0 0
        %1394 = vmatprep.subr.bf16.mxu0 0
        %1395 = vmatpush2.bf16.msra.mxu0 0
        %1396 = vmatprep.subr.bf16.mxu0 0
        %1397 = vmatpush2.bf16.msra.mxu0 0
        %1398 = vmatprep.subr.bf16.mxu0 0
        %1399 = vmatpush2.bf16.msra.mxu0 0
        %1400 = vmatprep.subr.bf16.mxu0 0
        %1401 = vmatpush2.bf16.msra.mxu0 0
        %1402 = vmatprep.subr.bf16.mxu0 0
        %1403 = vmatpush2.bf16.msra.mxu0 0
        %1404 = vmatprep.subr.bf16.mxu0 0
        %1405 = vmatpush2.bf16.msra.mxu0 0
        %1406 = vmatprep.mubr.bf16.mxu0 0
        %1407 = vmatmul.mubr.bf16.gmra.mxu0 %v1372
        %v1408 = vpop.f32.mrf.mxu0
        %v1409 = vadd.f32 0.0, %v1408
        %v1410 = vpop.f32.mrf.mxu0
        %v1411 = vpop.f32.mrf.mxu0
        %v1412 = vpop.f32.mrf.mxu0
        %1413 = vdwg.mxu0
        %v1415 = vsel %vm1236, %v1284, 0
        %1417 = vmatprep.subr.bf16.mxu0 0
        %1418 = vmatpush1.bf16.msra.mxu0 0
        %1419 = vmatprep.subr.bf16.mxu0 0
        %1420 = vmatpush1.bf16.msra.mxu0 0
        %1421 = vmatprep.subr.bf16.mxu0 0
        %1422 = vmatpush1.bf16.msra.mxu0 0
        %1423 = vmatprep.subr.bf16.mxu0 0
        %1424 = vmatpush1.bf16.msra.mxu0 0
        %1425 = vmatprep.subr.bf16.mxu0 0
        %1426 = vmatpush1.bf16.msra.mxu0 0
        %1427 = vmatprep.subr.bf16.mxu0 0
        %1428 = vmatpush1.bf16.msra.mxu0 0
        %1429 = vmatprep.subr.bf16.mxu0 0
        %1430 = vmatpush1.bf16.msra.mxu0 0
        %1431 = vmatprep.subr.bf16.mxu0 0
        %1432 = vmatpush1.bf16.msra.mxu0 %v1050
        %1433 = vmatprep.subr.bf16.mxu0 0
        %1434 = vmatpush2.bf16.msra.mxu0 0
        %1435 = vmatprep.subr.bf16.mxu0 0
        %1436 = vmatpush2.bf16.msra.mxu0 0
        %1437 = vmatprep.subr.bf16.mxu0 0
        %1438 = vmatpush2.bf16.msra.mxu0 0
        %1439 = vmatprep.subr.bf16.mxu0 0
        %1440 = vmatpush2.bf16.msra.mxu0 0
        %1441 = vmatprep.subr.bf16.mxu0 0
        %1442 = vmatpush2.bf16.msra.mxu0 0
        %1443 = vmatprep.subr.bf16.mxu0 0
        %1444 = vmatpush2.bf16.msra.mxu0 0
        %1445 = vmatprep.subr.bf16.mxu0 0
        %1446 = vmatpush2.bf16.msra.mxu0 0
        %1447 = vmatprep.subr.bf16.mxu0 0
        %1448 = vmatpush2.bf16.msra.mxu0 0
        %1449 = vmatprep.mubr.bf16.mxu0 0
        %1450 = vmatmul.mubr.bf16.gmra.mxu0 %v1415
        %v1451 = vpop.f32.mrf.mxu0
        %v1452 = vadd.f32 0.0, %v1451
        %v1453 = vpop.f32.mrf.mxu0
        %v1454 = vpop.f32.mrf.mxu0
        %v1455 = vpop.f32.mrf.mxu0
        %1456 = vdwg.mxu0
        %v1457 = vcombine.low %v1323, %v1409
        %v1458 = vcombine.high %v1323, %v1409
        %v1460 = vunpack.c.l.s4 1983009808
        %v1461 = vunpack.c.0.s8 %v1460
        %v1462 = vlaneseq
        %v1463 = vshrl.u32 %v1462, 7
        %v1464 = vsub.s32 %v1461, %v1463
        %v1465 = vrot.slane %v1457, %v1464
        %v1467 = vunpack.c.l.s4 1983009808
        %v1468 = vunpack.c.0.s8 %v1467
        %v1469 = vlaneseq
        %v1470 = vshrl.u32 %v1469, 7
        %v1471 = vsub.s32 %v1468, %v1470
        %v1472 = vrot.slane %v1458, %v1471
        %v1473 = vcombine.low %v1366, %v1452
        %v1474 = vcombine.high %v1366, %v1452
        %v1476 = vunpack.c.l.s4 1983009808
        %v1477 = vunpack.c.0.s8 %v1476
        %v1478 = vlaneseq
        %v1479 = vshrl.u32 %v1478, 7
        %v1480 = vsub.s32 %v1477, %v1479
        %v1481 = vrot.slane %v1473, %v1480
        %v1483 = vunpack.c.l.s4 1983009808
        %v1484 = vunpack.c.0.s8 %v1483
        %v1485 = vlaneseq
        %v1486 = vshrl.u32 %v1485, 7
        %v1487 = vsub.s32 %v1484, %v1486
        %v1488 = vrot.slane %v1474, %v1487
        %v1489 = vcombine.low %v1465, %v1481
        %v1490 = vcombine.high %v1465, %v1481
        %v1492 = vunpack.c.l.s4 1934713408
        %v1493 = vunpack.c.0.s8 %v1492
        %v1494 = vlaneseq
        %v1495 = vshrl.u32 %v1494, 7
        %v1496 = vsub.s32 %v1493, %v1495
        %v1497 = vrot.slane %v1489, %v1496
        %v1499 = vunpack.c.l.s4 1934713408
        %v1500 = vunpack.c.0.s8 %v1499
        %v1501 = vlaneseq
        %v1502 = vshrl.u32 %v1501, 7
        %v1503 = vsub.s32 %v1500, %v1502
        %v1504 = vrot.slane %v1490, %v1503
        %v1505 = vcombine.low %v1472, %v1488
        %v1506 = vcombine.high %v1472, %v1488
        %v1508 = vunpack.c.l.s4 1934713408
        %v1509 = vunpack.c.0.s8 %v1508
        %v1510 = vlaneseq
        %v1511 = vshrl.u32 %v1510, 7
        %v1512 = vsub.s32 %v1509, %v1511
        %v1513 = vrot.slane %v1505, %v1512
        %v1515 = vunpack.c.l.s4 1934713408
        %v1516 = vunpack.c.0.s8 %v1515
        %v1517 = vlaneseq
        %v1518 = vshrl.u32 %v1517, 7
        %v1519 = vsub.s32 %v1516, %v1518
        %v1520 = vrot.slane %v1506, %v1519
        %v1521 = vcombine.high %v1497, 0.0
        %v1522 = vcombine.high %v1504, 0.0
        %v1523 = vcombine.high %v1513, 0.0
        %v1524 = vcombine.high %v1520, 0.0
        %v1525 = vcombine.low %v1497, %v1504
        %v1527 = vunpack.c.l.s4 1983009808
        %v1528 = vunpack.c.0.s8 %v1527
        %v1529 = vlaneseq
        %v1530 = vshrl.u32 %v1529, 7
        %v1531 = vsub.s32 %v1528, %v1530
        %v1532 = vrot.slane %v1525, %v1531
        %v1533 = vcombine.low %v1521, %v1522
        %v1535 = vunpack.c.l.s4 1983009808
        %v1536 = vunpack.c.0.s8 %v1535
        %v1537 = vlaneseq
        %v1538 = vshrl.u32 %v1537, 7
        %v1539 = vsub.s32 %v1536, %v1538
        %v1540 = vrot.slane %v1533, %v1539
        %v1541 = vcombine.low %v1513, %v1520
        %v1543 = vunpack.c.l.s4 1983009808
        %v1544 = vunpack.c.0.s8 %v1543
        %v1545 = vlaneseq
        %v1546 = vshrl.u32 %v1545, 7
        %v1547 = vsub.s32 %v1544, %v1546
        %v1548 = vrot.slane %v1541, %v1547
        %v1549 = vcombine.low %v1523, %v1524
        %v1551 = vunpack.c.l.s4 1983009808
        %v1552 = vunpack.c.0.s8 %v1551
        %v1553 = vlaneseq
        %v1554 = vshrl.u32 %v1553, 7
        %v1555 = vsub.s32 %v1552, %v1554
        %v1556 = vrot.slane %v1549, %v1555
        %v1557 = vcombine.low %v1532, %v1540
        %v1558 = vcombine.high %v1532, %v1540
        %v1560 = vunpack.c.l.s4 1934713408
        %v1561 = vunpack.c.0.s8 %v1560
        %v1562 = vlaneseq
        %v1563 = vshrl.u32 %v1562, 7
        %v1564 = vsub.s32 %v1561, %v1563
        %v1565 = vrot.slane %v1557, %v1564
        %v1567 = vunpack.c.l.s4 1934713408
        %v1568 = vunpack.c.0.s8 %v1567
        %v1569 = vlaneseq
        %v1570 = vshrl.u32 %v1569, 7
        %v1571 = vsub.s32 %v1568, %v1570
        %v1572 = vrot.slane %v1558, %v1571
        %v1573 = vcombine.low %v1548, %v1556
        %v1574 = vcombine.high %v1548, %v1556
        %v1576 = vunpack.c.l.s4 1934713408
        %v1577 = vunpack.c.0.s8 %v1576
        %v1578 = vlaneseq
        %v1579 = vshrl.u32 %v1578, 7
        %v1580 = vsub.s32 %v1577, %v1579
        %v1581 = vrot.slane %v1573, %v1580
        %v1583 = vunpack.c.l.s4 1934713408
        %v1584 = vunpack.c.0.s8 %v1583
        %v1585 = vlaneseq
        %v1586 = vshrl.u32 %v1585, 7
        %v1587 = vsub.s32 %v1584, %v1586
        %v1588 = vrot.slane %v1574, %v1587
        %v1589 = vcombine.low %v1565, %v1581
        %v1590 = vcombine.high %v1565, %v1581
        %v1591 = vcombine.low %v1572, %v1588
        %v1592 = vcombine.high %v1572, %v1588
        %1594 = vrot.lane.b32.xlu0 %v1590, 8
        %v1595 = vpop.permute.xlu0 %1594
        %1598 = vrot.lane.b32.xlu0 %v1591, 16
        %v1599 = vpop.permute.xlu0 %1598
        %1602 = vrot.lane.b32.xlu0 %v1592, 24
        %v1603 = vpop.permute.xlu0 %1602
        %v1605 = vsel %vm1051, %v1589, %v1595
        %v1606 = vsel %vm1236, %v1605, %v1599
        %vm1607 = vcmask 195584
        %v1608 = vsel %vm1607, %v1606, %v1603
        %v1609 = vpack.c.bf16 %v1608, %v1608
        %v1614 = vunpack.c.l.b16 %v476
        %v1615 = vunpack.c.l.b16 %v477
        %v1616 = vunpack.c.l.b16 %v478
        %v1617 = vunpack.c.l.b16 %v479
        %v1618 = vpack.c.b16 %v1615, %v1614
        %v1619 = vpack.c.b16 %v1617, %v1616
        %v1621 = vsel %vm490, %v1609, 0
        %v1624 = vsel %vm490, %v1618, 0
        %v1627 = vsel %vm490, %v1619, 0
        %1629 = vmatprep.subr.bf16.mxu0 0
        %1630 = vmatpush1.bf16.xpose.msra.mxu0 0
        %1631 = vmatprep.subr.bf16.mxu0 0
        %1632 = vmatpush1.bf16.xpose.msra.mxu0 0
        %1633 = vmatprep.subr.bf16.mxu0 0
        %1634 = vmatpush1.bf16.xpose.msra.mxu0 0
        %1635 = vmatprep.subr.bf16.mxu0 0
        %1636 = vmatpush1.bf16.xpose.msra.mxu0 0
        %1637 = vmatprep.subr.bf16.mxu0 0
        %1638 = vmatpush1.bf16.xpose.msra.mxu0 0
        %1639 = vmatprep.subr.bf16.mxu0 0
        %1640 = vmatpush1.bf16.xpose.msra.mxu0 0
        %1641 = vmatprep.subr.bf16.mxu0 0
        %1642 = vmatpush1.bf16.xpose.msra.mxu0 %v1627
        %1643 = vmatprep.subr.bf16.mxu0 0
        %1644 = vmatpush1.bf16.xpose.msra.mxu0 %v1624
        %1645 = vmatprep.subr.bf16.mxu0 0
        %1646 = vmatpush2.bf16.xpose.msra.mxu0 0
        %1647 = vmatprep.subr.bf16.mxu0 0
        %1648 = vmatpush2.bf16.xpose.msra.mxu0 0
        %1649 = vmatprep.subr.bf16.mxu0 0
        %1650 = vmatpush2.bf16.xpose.msra.mxu0 0
        %1651 = vmatprep.subr.bf16.mxu0 0
        %1652 = vmatpush2.bf16.xpose.msra.mxu0 0
        %1653 = vmatprep.subr.bf16.mxu0 0
        %1654 = vmatpush2.bf16.xpose.msra.mxu0 0
        %1655 = vmatprep.subr.bf16.mxu0 0
        %1656 = vmatpush2.bf16.xpose.msra.mxu0 0
        %1657 = vmatprep.subr.bf16.mxu0 0
        %1658 = vmatpush2.bf16.xpose.msra.mxu0 0
        %1659 = vmatprep.subr.bf16.mxu0 0
        %1660 = vmatpush2.bf16.xpose.msra.mxu0 0
        %1661 = vmatprep.mubr.bf16.mxu0 0
        %1662 = vmatmul.mubr.bf16.gmra.mxu0 %v1621
        %v1663 = vpop.f32.mrf.mxu0
        %v1664 = vadd.f32 0.0, %v1663
        %v1665 = vpop.f32.mrf.mxu0
        %v1666 = vpop.f32.mrf.mxu0
        %v1667 = vpop.f32.mrf.mxu0
        %1668 = vdwg.mxu0
        %1669 = vst.msk [vmem:[%s399] sm:$0xff] %vm490, %v1664
        %s1670 = sand.u32 %s218, 1
        %s1671 = scalar_lea.sflag [#allocation4], %s1670
        %s1672 = sand.u32 %s218, 1
        %s1673 = smul.addr %s1672, 8
        %s1674 = scalar_lea.vmem [#allocation8], %s1673
        // Predicated region
        $region61: #{tpu_custom_call.1} parent=47 // pred_check
          %p1675 = pneg %p228
        $region62: #{tpu_custom_call.1} parent=47 // pred_check_branch
          %1677 = sbr.rel (%p1675) target = $region64
        $region63: #{tpu_custom_call.1} parent=47 // pred_region
          %s1679 = ssub.s32 128, 128
          %1680 = vsyncadd %s1671, %s1679
          %s1681 = smul.addr %s30, 2
          %s1682 = sadd.s32 %s29, %s1681
          %s1683 = smul.addr %s1682, 128
          %s1684 = scalar_lea.hbm %s7, %s1683
          %s1686 = sshll.u32 %s1674, 4
          %s1687 = int_to_ptr.vmem [resolvable:$true] %s1686
          %1689 = dma.vmem_to_hbm [thread:$0]  %s1687, 128, %s1684, %s1671
        $region64: #{tpu_custom_call.1} parent=47 // pred_fallthru
          _
      $region48: #{tpu_custom_call.1} parent=5 // pred_fallthru
        _
      %p1690 = scmp.le.s32.totalorder 2, %s20
      // Predicated region
      $region65: #{tpu_custom_call.1} parent=5 // pred_check
        %p1691 = pneg %p1690
      $region66: #{tpu_custom_call.1} parent=5 // pred_check_branch
        %1693 = sbr.rel (%p1691) target = $region68
      $region67: #{tpu_custom_call.1} parent=5 // pred_region
        %s1694 = ssub.s32 %s20, 2
        // Predicated region
        $region69: #{tpu_custom_call.1} parent=67 // pred_check
          %p1695 = pneg %p234
        $region70: #{tpu_custom_call.1} parent=67 // pred_check_branch
          %1697 = sbr.rel (%p1695) target = $region72
        $region71: #{tpu_custom_call.1} parent=67 // pred_region
          %s1698 = sand.u32 %s219, 1
          %s1699 = scalar_lea.sflag [#allocation4], %s1698
          %s1700 = sand.u32 %s219, 1
          %s1701 = smul.addr %s1700, 8
          %s1702 = scalar_lea.vmem [#allocation8], %s1701
          %1703 = dma.done %s1699, 128
        $region72: #{tpu_custom_call.1} parent=67 // pred_fallthru
          _
      $region68: #{tpu_custom_call.1} parent=5 // pred_fallthru
        _
    $region6: #{tpu_custom_call.1} parent=1 // loop_footer
      %s24 = sadd.s32 1, %s20
    $region7: #{tpu_custom_call.1} parent=1 // loop_footer_branch
      %19 = sbr.rel target = $region3
    $region8: #{tpu_custom_call.1} parent=1 // loop_exit
      _
    %1704 = vsyncpa [#allocation3], 1
    %s1705 = scalar_lea.sflag [#allocation3], 1
    %1706 = vsyncpa %s1705, 1
    %1707 = vsyncpa [#allocation6], 1
    %1708 = vsyncpa [#allocation4], 1
    %s1709 = scalar_lea.sflag [#allocation4], 1
    %1710 = vsyncpa %s1709, 1

</llo_original>
